<compile_context>
chip_gen: v5e
topology: v5e:2x2
jax: 0.10.0
libtpu: 0.0.40
codegen_flags: <defaults>
</compile_context>

<pallas_src>
import functools
import math

import jax
import jax.numpy as jnp
from jax.experimental import pallas as pl
from jax.experimental.pallas import tpu as pltpu


# ----------------------------- config ---------------------------------------
class Config:
    vocab_size = 128            # embed_tokens exists in torch but forward takes inputs_embeds
    hidden_size = 32
    intermediate_size = 64
    num_hidden_layers = 2
    num_attention_heads = 4
    num_key_value_heads = 2
    head_dim = 16
    rms_norm_eps = 1e-6
    rope_theta = 10000.0


# --------------------------- fused whole-model kernel ------------------------
def _rmsnorm_f32(x, w_row, eps):
    # x: (M, H) fp32, w_row: (1, H). Matches PhysionetRMSNorm: fp32 stats, (1 + w) scale.
    var = jnp.mean(x * x, axis=-1, keepdims=True)
    return x * jax.lax.rsqrt(var + eps) * (1.0 + w_row)


def _model_kernel(x_ref, rope_ref, amask_ref, wA_ref, wB_ref, nrm_ref, o_ref, *, dims):
    B, S, H, nh, nkv, D, I, L, eps = dims
    qdim, kvdim = nh * D, nkv * D
    pqkv = 2 * qdim + 3 * kvdim              # fused [q|k|v|q_rot|k_rot] projection width
    NQ, NK = nh * B * S, nkv * B * S
    BS = B * S

    # inputs_embeds * sqrt(hidden_size)  (Gemma-style embedding scaling)
    x = x_ref[...].astype(jnp.float32) * jnp.float32(H ** 0.5)        # (B*S, H)

    rope = rope_ref[...].astype(jnp.float32)                          # (B*S, 2*qdim+2*kvdim)
    cos_q = rope[:, :qdim]
    sin_q = rope[:, qdim:2 * qdim]
    cos_k = rope[:, 2 * qdim:2 * qdim + kvdim]
    sin_k = rope[:, 2 * qdim + kvdim:]

    amask = amask_ref[...].astype(jnp.float32)                        # (NQ, NK) block-diag mask
    nrm = nrm_ref[...].astype(jnp.float32)                            # (2L+1, H)
    scale = jnp.float32(1.0 / math.sqrt(D))

    for l in range(L):                                                # static unroll (L = 2)
        wA = wA_ref[l]                                                # (H, pqkv + 2I)
        wB = wB_ref[l]                                                # (qdim, 2H)

        # ---------------- attention ----------------
        h1 = _rmsnorm_f32(x, nrm[2 * l:2 * l + 1, :], eps)            # (B*S, H)
        qkv = jnp.dot(h1, wA[:, :pqkv],
                      preferred_element_type=jnp.float32)             # (B*S, 224) lane-dense
        q = qkv[:, :qdim]
        k = qkv[:, qdim:qdim + kvdim]
        v = qkv[:, qdim + kvdim:qdim + 2 * kvdim]
        qr = qkv[:, qdim + 2 * kvdim:2 * qdim + 2 * kvdim]            # rotate_half(q) via weights
        kr = qkv[:, 2 * qdim + 2 * kvdim:]                            # rotate_half(k) via weights

        # RoPE (matches apply_rotary_pos_emb); fold 1/sqrt(D) into q.
        q = (q * cos_q + qr * sin_q) * scale                          # (B*S, nh*D)
        k = k * cos_k + kr * sin_k                                    # (B*S, nkv*D)

        # Restack to (head, batch, seq) rows: static lane slices + one sublane concat each.
        q_t = jnp.concatenate([q[:, h * D:(h + 1) * D] for h in range(nh)], axis=0)   # (NQ, D)
        k_t = jnp.concatenate([k[:, g * D:(g + 1) * D] for g in range(nkv)], axis=0)  # (NK, D)
        v_t = jnp.concatenate([v[:, g * D:(g + 1) * D] for g in range(nkv)], axis=0)  # (NK, D)

        # One block-diagonal attention pass for all (batch, head) pairs (GQA handled by mask).
        s = jax.lax.dot_general(q_t, k_t, (((1,), (1,)), ((), ())),
                                preferred_element_type=jnp.float32)   # (NQ, NK)
        s = s + amask
        s = s - jnp.max(s, axis=-1, keepdims=True)
        p = jnp.exp(s)
        denom = jnp.sum(p, axis=-1, keepdims=True)
        ao = jnp.dot(p, v_t, preferred_element_type=jnp.float32)      # (NQ, D)
        ao = ao * pl.reciprocal(denom, approx=True)                   # EUP vrcp, post-PV scaling
        # TODO(synk): attention_dropout (p=0.0, eval mode) is a no-op and is not implemented.

        # back to (batch*seq, nh*D) rows for o_proj: nh sublane slices + one lane concat.
        attn = jnp.concatenate([ao[h * BS:(h + 1) * BS, :] for h in range(nh)], axis=1)
        x = x + jnp.dot(attn, wB[:, :H], preferred_element_type=jnp.float32)

        # ---------------- gated MLP -----------------
        h2 = _rmsnorm_f32(x, nrm[2 * l + 1:2 * l + 2, :], eps)
        gu = jnp.dot(h2, wA[:, pqkv:], preferred_element_type=jnp.float32)   # (B*S, 2I)
        act = jax.nn.gelu(gu[:, :I], approximate=True) * gu[:, I:]           # tanh-gelu(gate)*up
        x = x + jnp.dot(act, wB[:, H:], preferred_element_type=jnp.float32)

    x = _rmsnorm_f32(x, nrm[2 * L:2 * L + 1, :], eps)                  # final norm
    o_ref[...] = x.astype(o_ref.dtype)


# ----------------------------- JAX glue (rope tables, packing) ----------------
def compute_rope(position_ids, head_dim, base):
    inv_freq = 1.0 / (base ** (jnp.arange(0, head_dim, 2, dtype=jnp.float32) / head_dim))
    freqs = position_ids[..., None].astype(jnp.float32) * inv_freq[None, None, :]  # (B, S, D/2)
    emb = jnp.concatenate([freqs, freqs], axis=-1)                                 # (B, S, D)
    return jnp.cos(emb), jnp.sin(emb)


def pack_params(params, cfg):
    """One-time weight prep: pre-transpose, fold rotate_half into wq/wk columns, fuse, stack."""
    H, D, I = cfg.hidden_size, cfg.head_dim, cfg.intermediate_size
    nh, nkv = cfg.num_attention_heads, cfg.num_key_value_heads
    assert nh * D == I, "packing assumes o_proj and down_proj share the same input width"

    d2 = D // 2
    R = jnp.zeros((D, D), jnp.float32)
    R = R.at[d2:, :d2].set(-jnp.eye(d2, dtype=jnp.float32))
    R = R.at[:d2, d2:].set(jnp.eye(d2, dtype=jnp.float32))            # q @ R == rotate_half(q)
    Rq = jnp.kron(jnp.eye(nh, dtype=jnp.float32), R)
    Rk = jnp.kron(jnp.eye(nkv, dtype=jnp.float32), R)

    wA, wB, nrows = [], [], []
    for lp in params["layers"]:
        wq, wk, wv = lp["q"].T, lp["k"].T, lp["v"].T
        wqkv = jnp.concatenate([wq, wk, wv, wq @ Rq, wk @ Rk], axis=1)        # (H, 2q+3kv)
        wgu = jnp.concatenate([lp["gate"].T, lp["up"].T], axis=1)             # (H, 2I)
        wA.append(jnp.concatenate([wqkv, wgu], axis=1))                       # (H, 224+128)
        wB.append(jnp.concatenate([lp["o"].T, lp["down"].T], axis=1))         # (nh*D, 2H)
        nrows.append(lp["input_ln"])
        nrows.append(lp["post_ln"])
    nrows.append(params["norm"])
    return dict(wA=jnp.stack(wA), wB=jnp.stack(wB), norms=jnp.stack(nrows))


def physionet_forward(packed, inputs_embeds, attention_mask, position_ids, cfg):
    B, S, H = inputs_embeds.shape
    nh, nkv, D = cfg.num_attention_heads, cfg.num_key_value_heads, cfg.head_dim
    rep = nh // nkv

    # Head-tiled RoPE tables, fused into one lane-dense buffer [cos_q|sin_q|cos_k|sin_k].
    cos, sin = compute_rope(position_ids, D, cfg.rope_theta)
    cos2 = cos.reshape(B * S, D)
    sin2 = sin.reshape(B * S, D)
    rope = jnp.concatenate([jnp.tile(cos2, (1, nh)), jnp.tile(sin2, (1, nh)),
                            jnp.tile(cos2, (1, nkv)), jnp.tile(sin2, (1, nkv))], axis=-1)

    # Block-diagonal additive mask for rows ordered (head, batch, seq) and
    # cols ordered (kv_head, batch, seq): attention_mask on the valid blocks, -1e30 elsewhere.
    qh = jnp.repeat(jnp.arange(nh), B * S)
    qb = jnp.tile(jnp.repeat(jnp.arange(B), S), nh)
    kg = jnp.repeat(jnp.arange(nkv), B * S)
    kb = jnp.tile(jnp.repeat(jnp.arange(B), S), nkv)
    key_add = jnp.tile(attention_mask.astype(jnp.float32).reshape(-1), nkv)
    valid = (qb[:, None] == kb[None, :]) & ((qh // rep)[:, None] == kg[None, :])
    amask = jnp.where(valid, key_add[None, :], jnp.float32(-1e30))

    dims = (B, S, H, nh, nkv, D, cfg.intermediate_size,
            cfg.num_hidden_layers, cfg.rms_norm_eps)
    vmem = pl.BlockSpec(memory_space=pltpu.MemorySpace.VMEM)   # full-array, VMEM-resident
    out2 = pl.pallas_call(
        functools.partial(_model_kernel, dims=dims),
        out_shape=jax.ShapeDtypeStruct((B * S, H), inputs_embeds.dtype),
        in_specs=[vmem] * 6,
        out_specs=vmem,
    )(inputs_embeds.reshape(B * S, H), rope, amask,
      packed["wA"], packed["wB"], packed["norms"])
    return out2.reshape(B, S, H)


# ----------------------------- params ----------------------------------------
def init_params(key, cfg):
    H, D, I = cfg.hidden_size, cfg.head_dim, cfg.intermediate_size
    nh, nkv = cfg.num_attention_heads, cfg.num_key_value_heads

    def lin(k, out_f, in_f):
        return 0.02 * jax.random.normal(k, (out_f, in_f), jnp.float32)   # nn.Linear (out, in)

    k_layers, k_norm = jax.random.split(key)
    layers = []
    for lk in jax.random.split(k_layers, cfg.num_hidden_layers):
        ks = jax.random.split(lk, 9)
        layers.append({
            "q": lin(ks[0], nh * D, H),
            "k": lin(ks[1], nkv * D, H),
            "v": lin(ks[2], nkv * D, H),
            "o": lin(ks[3], H, nh * D),
            "gate": lin(ks[4], I, H),
            "up": lin(ks[5], I, H),
            "down": lin(ks[6], H, I),
            # small nonzero RMSNorm weights to exercise the (1 + w) scale path
            "input_ln": 0.1 * jax.random.normal(ks[7], (H,), jnp.float32),
            "post_ln": 0.1 * jax.random.normal(ks[8], (H,), jnp.float32),
        })
    return {"layers": layers,
            "norm": 0.1 * jax.random.normal(k_norm, (H,), jnp.float32)}


# ----------------------------- plain-JAX reference (for verification) ---------
def _reference_forward(params, inputs_embeds, attention_mask, position_ids, cfg):
    B, S, H = inputs_embeds.shape
    nh, nkv, D = cfg.num_attention_heads, cfg.num_key_value_heads, cfg.head_dim
    eps = cfg.rms_norm_eps

    def rms(x, w):
        v = jnp.mean(x * x, axis=-1, keepdims=True)
        return x * jax.lax.rsqrt(v + eps) * (1.0 + w)

    def rot(t):
        d = t.shape[-1] // 2
        return jnp.concatenate([-t[..., d:], t[..., :d]], axis=-1)

    x = inputs_embeds.astype(jnp.float32) * jnp.float32(H ** 0.5)
    cos, sin = compute_rope(position_ids, D, cfg.rope_theta)          # (B, S, D)
    for lp in params["layers"]:
        res = x
        h2 = rms(x, lp["input_ln"]).reshape(B * S, H)
        q = (h2 @ lp["q"].T).reshape(B, S, nh, D).transpose(0, 2, 1, 3)
        k = (h2 @ lp["k"].T).reshape(B, S, nkv, D).transpose(0, 2, 1, 3)
        v = (h2 @ lp["v"].T).reshape(B, S, nkv, D).transpose(0, 2, 1, 3)
        q = q * cos[:, None] + rot(q) * sin[:, None]
        k = k * cos[:, None] + rot(k) * sin[:, None]
        rep = nh // nkv
        k = jnp.repeat(k, rep, axis=1)
        v = jnp.repeat(v, rep, axis=1)
        s = jnp.einsum("bhqd,bhkd->bhqk", q, k) / math.sqrt(D)
        s = s + attention_mask[:, None, None, :]
        p = jax.nn.softmax(s, axis=-1)
        a = jnp.einsum("bhqk,bhkd->bhqd", p, v).transpose(0, 2, 1, 3).reshape(B * S, nh * D)
        x = res + (a @ lp["o"].T).reshape(B, S, H)
        res = x
        h2 = rms(x, lp["post_ln"]).reshape(B * S, H)
        g = h2 @ lp["gate"].T
        u = h2 @ lp["up"].T
        x = res + ((jax.nn.gelu(g, approximate=True) * u) @ lp["down"].T).reshape(B, S, H)
    return rms(x, params["norm"])


# ----------------------------- main -------------------------------------------
if __name__ == "__main__":
    cfg = Config()
    B, S, H = 2, 8, cfg.hidden_size

    key = jax.random.PRNGKey(0)
    k_params, k_embed = jax.random.split(key)
    params = init_params(k_params, cfg)
    packed = pack_params(params, cfg)   # one-time: pre-transposed, rot-folded, fused weights

    inputs_embeds = jax.random.normal(k_embed, (B, S, H), jnp.float32)
    position_ids = jnp.broadcast_to(jnp.arange(S, dtype=jnp.int32)[None, :], (B, S))
    # additive attention mask (0 = attend, -1e9 = masked); mask out last 2 keys of batch 1
    attention_mask = jnp.zeros((B, S), jnp.float32).at[1, -2:].set(-1e9)

    fwd = jax.jit(lambda p, e, m, pid: physionet_forward(p, e, m, pid, cfg))
    out = jax.block_until_ready(fwd(packed, inputs_embeds, attention_mask, position_ids))

    assert out.shape == (B, S, H) and out.dtype == jnp.float32
    assert bool(jnp.all(jnp.isfinite(out)))

    ref = _reference_forward(params, inputs_embeds, attention_mask, position_ids, cfg)
    max_err = float(jnp.max(jnp.abs(out - ref)))
    assert max_err < 2e-3, f"mismatch vs plain-JAX reference: {max_err}"

    print("KERNEL_OK")
</pallas_src>

<mosaic_0001>
module attributes {stable_mosaic.version = 11 : i64} {
  func.func @_model_kernel(%arg0: memref<16x32xf32, #tpu.memory_space<vmem>>, %arg1: memref<16x192xf32, #tpu.memory_space<vmem>>, %arg2: memref<64x32xf32, #tpu.memory_space<vmem>>, %arg3: memref<2x32x352xf32, #tpu.memory_space<vmem>>, %arg4: memref<2x64x64xf32, #tpu.memory_space<vmem>>, %arg5: memref<5x32xf32, #tpu.memory_space<vmem>>, %arg6: memref<16x32xf32, #tpu.memory_space<vmem>>) attributes {dimension_semantics = [], scalar_prefetch = 0 : i64, scratch_operands = 0 : i64, tpu.core_type = #tpu.core_type<tc>} {
    %c0 = arith.constant 0 : index
    %c0_0 = arith.constant 0 : index
    %0 = vector.load %arg0[%c0, %c0_0] : memref<16x32xf32, #tpu.memory_space<vmem>>, vector<16x32xf32>
    %cst = arith.constant 5.65685415 : f32
    %1 = vector.broadcast %cst : f32 to vector<16x32xf32>
    %2 = arith.mulf %0, %1 : vector<16x32xf32>
    %c0_1 = arith.constant 0 : index
    %c0_2 = arith.constant 0 : index
    %3 = vector.load %arg1[%c0_1, %c0_2] : memref<16x192xf32, #tpu.memory_space<vmem>>, vector<16x192xf32>
    %4 = vector.extract_strided_slice %3 {offsets = [0, 0], sizes = [16, 64], strides = [1, 1]} : vector<16x192xf32> to vector<16x64xf32>
    %5 = vector.extract_strided_slice %3 {offsets = [0, 64], sizes = [16, 64], strides = [1, 1]} : vector<16x192xf32> to vector<16x64xf32>
    %6 = vector.extract_strided_slice %3 {offsets = [0, 128], sizes = [16, 32], strides = [1, 1]} : vector<16x192xf32> to vector<16x32xf32>
    %7 = vector.extract_strided_slice %3 {offsets = [0, 160], sizes = [16, 32], strides = [1, 1]} : vector<16x192xf32> to vector<16x32xf32>
    %c0_3 = arith.constant 0 : index
    %c0_4 = arith.constant 0 : index
    %8 = vector.load %arg2[%c0_3, %c0_4] : memref<64x32xf32, #tpu.memory_space<vmem>>, vector<64x32xf32>
    %c0_5 = arith.constant 0 : index
    %c0_6 = arith.constant 0 : index
    %9 = vector.load %arg5[%c0_5, %c0_6] : memref<5x32xf32, #tpu.memory_space<vmem>>, vector<5x32xf32>
    %c0_7 = arith.constant 0 : index
    %c0_8 = arith.constant 0 : index
    %c0_9 = arith.constant 0 : index
    %10 = vector.load %arg3[%c0_7, %c0_8, %c0_9] : memref<2x32x352xf32, #tpu.memory_space<vmem>>, vector<1x32x352xf32>
    %11 = vector.shape_cast %10 : vector<1x32x352xf32> to vector<32x352xf32>
    %c0_10 = arith.constant 0 : index
    %c0_11 = arith.constant 0 : index
    %c0_12 = arith.constant 0 : index
    %12 = vector.load %arg4[%c0_10, %c0_11, %c0_12] : memref<2x64x64xf32, #tpu.memory_space<vmem>>, vector<1x64x64xf32>
    %13 = vector.shape_cast %12 : vector<1x64x64xf32> to vector<64x64xf32>
    %14 = vector.extract_strided_slice %9 {offsets = [0, 0], sizes = [1, 32], strides = [1, 1]} : vector<5x32xf32> to vector<1x32xf32>
    %15 = arith.mulf %2, %2 : vector<16x32xf32>
    %cst_13 = arith.constant dense<0.000000e+00> : vector<16xf32>
    %16 = vector.multi_reduction <add>, %15, %cst_13 [1] : vector<16x32xf32> to vector<16xf32>
    %17 = vector.shape_cast %16 : vector<16xf32> to vector<16x1xf32>
    %cst_14 = arith.constant 3.200000e+01 : f32
    %18 = vector.broadcast %cst_14 : f32 to vector<16x1xf32>
    %19 = arith.divf %17, %18 : vector<16x1xf32>
    %cst_15 = arith.constant 9.99999997E-7 : f32
    %20 = vector.broadcast %cst_15 : f32 to vector<16x1xf32>
    %21 = arith.addf %19, %20 : vector<16x1xf32>
    %22 = math.rsqrt %21 : vector<16x1xf32>
    %23 = vector.broadcast %22 : vector<16x1xf32> to vector<16x32xf32>
    %24 = arith.mulf %2, %23 : vector<16x32xf32>
    %cst_16 = arith.constant 1.000000e+00 : f32
    %25 = vector.broadcast %cst_16 : f32 to vector<1x32xf32>
    %26 = arith.addf %25, %14 : vector<1x32xf32>
    %27 = vector.broadcast %26 : vector<1x32xf32> to vector<16x32xf32>
    %28 = arith.mulf %24, %27 : vector<16x32xf32>
    %29 = vector.extract_strided_slice %11 {offsets = [0, 0], sizes = [32, 224], strides = [1, 1]} : vector<32x352xf32> to vector<32x224xf32>
    %cst_17 = arith.constant dense<0.000000e+00> : vector<16x224xf32>
    %30 = tpu.matmul %28, %29, %cst_17 {dimension_numbers = #tpu.dot_dimension_numbers<[1], [0], [0], [1], [0, 0, 1, 1], [], []>} : vector<16x32xf32>, vector<32x224xf32>, vector<16x224xf32> -> vector<16x224xf32>
    %31 = vector.extract_strided_slice %30 {offsets = [0, 0], sizes = [16, 64], strides = [1, 1]} : vector<16x224xf32> to vector<16x64xf32>
    %32 = vector.extract_strided_slice %30 {offsets = [0, 64], sizes = [16, 32], strides = [1, 1]} : vector<16x224xf32> to vector<16x32xf32>
    %33 = vector.extract_strided_slice %30 {offsets = [0, 96], sizes = [16, 32], strides = [1, 1]} : vector<16x224xf32> to vector<16x32xf32>
    %34 = vector.extract_strided_slice %30 {offsets = [0, 128], sizes = [16, 64], strides = [1, 1]} : vector<16x224xf32> to vector<16x64xf32>
    %35 = vector.extract_strided_slice %30 {offsets = [0, 192], sizes = [16, 32], strides = [1, 1]} : vector<16x224xf32> to vector<16x32xf32>
    %36 = arith.mulf %31, %4 : vector<16x64xf32>
    %37 = arith.mulf %34, %5 : vector<16x64xf32>
    %38 = arith.addf %36, %37 : vector<16x64xf32>
    %cst_18 = arith.constant 2.500000e-01 : f32
    %39 = vector.broadcast %cst_18 : f32 to vector<16x64xf32>
    %40 = arith.mulf %38, %39 : vector<16x64xf32>
    %41 = arith.mulf %32, %6 : vector<16x32xf32>
    %42 = arith.mulf %35, %7 : vector<16x32xf32>
    %43 = arith.addf %41, %42 : vector<16x32xf32>
    %44 = vector.extract_strided_slice %40 {offsets = [0, 0], sizes = [16, 16], strides = [1, 1]} : vector<16x64xf32> to vector<16x16xf32>
    %45 = vector.extract_strided_slice %40 {offsets = [0, 16], sizes = [16, 16], strides = [1, 1]} : vector<16x64xf32> to vector<16x16xf32>
    %46 = vector.extract_strided_slice %40 {offsets = [0, 32], sizes = [16, 16], strides = [1, 1]} : vector<16x64xf32> to vector<16x16xf32>
    %47 = vector.extract_strided_slice %40 {offsets = [0, 48], sizes = [16, 16], strides = [1, 1]} : vector<16x64xf32> to vector<16x16xf32>
    %48 = tpu.concatenate %44, %45, %46, %47 in 0 : vector<16x16xf32>, vector<16x16xf32>, vector<16x16xf32>, vector<16x16xf32> -> vector<64x16xf32>
    %49 = vector.extract_strided_slice %43 {offsets = [0, 0], sizes = [16, 16], strides = [1, 1]} : vector<16x32xf32> to vector<16x16xf32>
    %50 = vector.extract_strided_slice %43 {offsets = [0, 16], sizes = [16, 16], strides = [1, 1]} : vector<16x32xf32> to vector<16x16xf32>
    %51 = tpu.concatenate %49, %50 in 0 : vector<16x16xf32>, vector<16x16xf32> -> vector<32x16xf32>
    %52 = vector.extract_strided_slice %33 {offsets = [0, 0], sizes = [16, 16], strides = [1, 1]} : vector<16x32xf32> to vector<16x16xf32>
    %53 = vector.extract_strided_slice %33 {offsets = [0, 16], sizes = [16, 16], strides = [1, 1]} : vector<16x32xf32> to vector<16x16xf32>
    %54 = tpu.concatenate %52, %53 in 0 : vector<16x16xf32>, vector<16x16xf32> -> vector<32x16xf32>
    %cst_19 = arith.constant dense<0.000000e+00> : vector<64x32xf32>
    %55 = tpu.matmul %48, %51, %cst_19 {dimension_numbers = #tpu.dot_dimension_numbers<[1], [1], [0], [0], [0, 0, 1, 0], [], []>} : vector<64x16xf32>, vector<32x16xf32>, vector<64x32xf32> -> vector<64x32xf32>
    %56 = arith.addf %55, %8 : vector<64x32xf32>
    %cst_20 = arith.constant dense<0xFF800000> : vector<64xf32>
    %57 = vector.multi_reduction <maximumf>, %56, %cst_20 [1] : vector<64x32xf32> to vector<64xf32>
    %58 = vector.shape_cast %57 : vector<64xf32> to vector<64x1xf32>
    %59 = vector.broadcast %58 : vector<64x1xf32> to vector<64x32xf32>
    %60 = arith.subf %56, %59 : vector<64x32xf32>
    %61 = math.exp %60 : vector<64x32xf32>
    %cst_21 = arith.constant dense<0.000000e+00> : vector<64xf32>
    %62 = vector.multi_reduction <add>, %61, %cst_21 [1] : vector<64x32xf32> to vector<64xf32>
    %63 = vector.shape_cast %62 : vector<64xf32> to vector<64x1xf32>
    %cst_22 = arith.constant dense<0.000000e+00> : vector<64x16xf32>
    %64 = tpu.matmul %61, %54, %cst_22 {dimension_numbers = #tpu.dot_dimension_numbers<[1], [0], [0], [1], [0, 0, 1, 1], [], []>} : vector<64x32xf32>, vector<32x16xf32>, vector<64x16xf32> -> vector<64x16xf32>
    %65 = tpu.reciprocal %63 {approx = true} : vector<64x1xf32> -> vector<64x1xf32>
    %66 = vector.broadcast %65 : vector<64x1xf32> to vector<64x16xf32>
    %67 = arith.mulf %64, %66 : vector<64x16xf32>
    %68 = vector.extract_strided_slice %67 {offsets = [0, 0], sizes = [16, 16], strides = [1, 1]} : vector<64x16xf32> to vector<16x16xf32>
    %69 = vector.extract_strided_slice %67 {offsets = [16, 0], sizes = [16, 16], strides = [1, 1]} : vector<64x16xf32> to vector<16x16xf32>
    %70 = vector.extract_strided_slice %67 {offsets = [32, 0], sizes = [16, 16], strides = [1, 1]} : vector<64x16xf32> to vector<16x16xf32>
    %71 = vector.extract_strided_slice %67 {offsets = [48, 0], sizes = [16, 16], strides = [1, 1]} : vector<64x16xf32> to vector<16x16xf32>
    %72 = tpu.concatenate %68, %69, %70, %71 in 1 : vector<16x16xf32>, vector<16x16xf32>, vector<16x16xf32>, vector<16x16xf32> -> vector<16x64xf32>
    %73 = vector.extract_strided_slice %13 {offsets = [0, 0], sizes = [64, 32], strides = [1, 1]} : vector<64x64xf32> to vector<64x32xf32>
    %cst_23 = arith.constant dense<0.000000e+00> : vector<16x32xf32>
    %74 = tpu.matmul %72, %73, %cst_23 {dimension_numbers = #tpu.dot_dimension_numbers<[1], [0], [0], [1], [0, 0, 1, 1], [], []>} : vector<16x64xf32>, vector<64x32xf32>, vector<16x32xf32> -> vector<16x32xf32>
    %75 = arith.addf %2, %74 : vector<16x32xf32>
    %76 = vector.extract_strided_slice %9 {offsets = [1, 0], sizes = [1, 32], strides = [1, 1]} : vector<5x32xf32> to vector<1x32xf32>
    %77 = arith.mulf %75, %75 : vector<16x32xf32>
    %cst_24 = arith.constant dense<0.000000e+00> : vector<16xf32>
    %78 = vector.multi_reduction <add>, %77, %cst_24 [1] : vector<16x32xf32> to vector<16xf32>
    %79 = vector.shape_cast %78 : vector<16xf32> to vector<16x1xf32>
    %cst_25 = arith.constant 3.200000e+01 : f32
    %80 = vector.broadcast %cst_25 : f32 to vector<16x1xf32>
    %81 = arith.divf %79, %80 : vector<16x1xf32>
    %cst_26 = arith.constant 9.99999997E-7 : f32
    %82 = vector.broadcast %cst_26 : f32 to vector<16x1xf32>
    %83 = arith.addf %81, %82 : vector<16x1xf32>
    %84 = math.rsqrt %83 : vector<16x1xf32>
    %85 = vector.broadcast %84 : vector<16x1xf32> to vector<16x32xf32>
    %86 = arith.mulf %75, %85 : vector<16x32xf32>
    %cst_27 = arith.constant 1.000000e+00 : f32
    %87 = vector.broadcast %cst_27 : f32 to vector<1x32xf32>
    %88 = arith.addf %87, %76 : vector<1x32xf32>
    %89 = vector.broadcast %88 : vector<1x32xf32> to vector<16x32xf32>
    %90 = arith.mulf %86, %89 : vector<16x32xf32>
    %91 = vector.extract_strided_slice %11 {offsets = [0, 224], sizes = [32, 128], strides = [1, 1]} : vector<32x352xf32> to vector<32x128xf32>
    %cst_28 = arith.constant dense<0.000000e+00> : vector<16x128xf32>
    %92 = tpu.matmul %90, %91, %cst_28 {dimension_numbers = #tpu.dot_dimension_numbers<[1], [0], [0], [1], [0, 0, 1, 1], [], []>} : vector<16x32xf32>, vector<32x128xf32>, vector<16x128xf32> -> vector<16x128xf32>
    %93 = vector.extract_strided_slice %92 {offsets = [0, 0], sizes = [16, 64], strides = [1, 1]} : vector<16x128xf32> to vector<16x64xf32>
    %94 = arith.mulf %93, %93 : vector<16x64xf32>
    %95 = arith.mulf %93, %94 : vector<16x64xf32>
    %cst_29 = arith.constant 4.471500e-02 : f32
    %96 = vector.broadcast %cst_29 : f32 to vector<16x64xf32>
    %97 = arith.mulf %96, %95 : vector<16x64xf32>
    %98 = arith.addf %93, %97 : vector<16x64xf32>
    %cst_30 = arith.constant 0.797884583 : f32
    %99 = vector.broadcast %cst_30 : f32 to vector<16x64xf32>
    %100 = arith.mulf %99, %98 : vector<16x64xf32>
    %101 = math.tanh %100 : vector<16x64xf32>
    %cst_31 = arith.constant 1.000000e+00 : f32
    %102 = vector.broadcast %cst_31 : f32 to vector<16x64xf32>
    %103 = arith.addf %102, %101 : vector<16x64xf32>
    %cst_32 = arith.constant 5.000000e-01 : f32
    %104 = vector.broadcast %cst_32 : f32 to vector<16x64xf32>
    %105 = arith.mulf %104, %103 : vector<16x64xf32>
    %106 = arith.mulf %93, %105 : vector<16x64xf32>
    %107 = vector.extract_strided_slice %92 {offsets = [0, 64], sizes = [16, 64], strides = [1, 1]} : vector<16x128xf32> to vector<16x64xf32>
    %108 = arith.mulf %106, %107 : vector<16x64xf32>
    %109 = vector.extract_strided_slice %13 {offsets = [0, 32], sizes = [64, 32], strides = [1, 1]} : vector<64x64xf32> to vector<64x32xf32>
    %cst_33 = arith.constant dense<0.000000e+00> : vector<16x32xf32>
    %110 = tpu.matmul %108, %109, %cst_33 {dimension_numbers = #tpu.dot_dimension_numbers<[1], [0], [0], [1], [0, 0, 1, 1], [], []>} : vector<16x64xf32>, vector<64x32xf32>, vector<16x32xf32> -> vector<16x32xf32>
    %111 = arith.addf %75, %110 : vector<16x32xf32>
    %c1 = arith.constant 1 : index
    %c0_34 = arith.constant 0 : index
    %c0_35 = arith.constant 0 : index
    %112 = vector.load %arg3[%c1, %c0_34, %c0_35] : memref<2x32x352xf32, #tpu.memory_space<vmem>>, vector<1x32x352xf32>
    %113 = vector.shape_cast %112 : vector<1x32x352xf32> to vector<32x352xf32>
    %c1_36 = arith.constant 1 : index
    %c0_37 = arith.constant 0 : index
    %c0_38 = arith.constant 0 : index
    %114 = vector.load %arg4[%c1_36, %c0_37, %c0_38] : memref<2x64x64xf32, #tpu.memory_space<vmem>>, vector<1x64x64xf32>
    %115 = vector.shape_cast %114 : vector<1x64x64xf32> to vector<64x64xf32>
    %116 = vector.extract_strided_slice %9 {offsets = [2, 0], sizes = [1, 32], strides = [1, 1]} : vector<5x32xf32> to vector<1x32xf32>
    %117 = arith.mulf %111, %111 : vector<16x32xf32>
    %cst_39 = arith.constant dense<0.000000e+00> : vector<16xf32>
    %118 = vector.multi_reduction <add>, %117, %cst_39 [1] : vector<16x32xf32> to vector<16xf32>
    %119 = vector.shape_cast %118 : vector<16xf32> to vector<16x1xf32>
    %cst_40 = arith.constant 3.200000e+01 : f32
    %120 = vector.broadcast %cst_40 : f32 to vector<16x1xf32>
    %121 = arith.divf %119, %120 : vector<16x1xf32>
    %cst_41 = arith.constant 9.99999997E-7 : f32
    %122 = vector.broadcast %cst_41 : f32 to vector<16x1xf32>
    %123 = arith.addf %121, %122 : vector<16x1xf32>
    %124 = math.rsqrt %123 : vector<16x1xf32>
    %125 = vector.broadcast %124 : vector<16x1xf32> to vector<16x32xf32>
    %126 = arith.mulf %111, %125 : vector<16x32xf32>
    %cst_42 = arith.constant 1.000000e+00 : f32
    %127 = vector.broadcast %cst_42 : f32 to vector<1x32xf32>
    %128 = arith.addf %127, %116 : vector<1x32xf32>
    %129 = vector.broadcast %128 : vector<1x32xf32> to vector<16x32xf32>
    %130 = arith.mulf %126, %129 : vector<16x32xf32>
    %131 = vector.extract_strided_slice %113 {offsets = [0, 0], sizes = [32, 224], strides = [1, 1]} : vector<32x352xf32> to vector<32x224xf32>
    %cst_43 = arith.constant dense<0.000000e+00> : vector<16x224xf32>
    %132 = tpu.matmul %130, %131, %cst_43 {dimension_numbers = #tpu.dot_dimension_numbers<[1], [0], [0], [1], [0, 0, 1, 1], [], []>} : vector<16x32xf32>, vector<32x224xf32>, vector<16x224xf32> -> vector<16x224xf32>
    %133 = vector.extract_strided_slice %132 {offsets = [0, 0], sizes = [16, 64], strides = [1, 1]} : vector<16x224xf32> to vector<16x64xf32>
    %134 = vector.extract_strided_slice %132 {offsets = [0, 64], sizes = [16, 32], strides = [1, 1]} : vector<16x224xf32> to vector<16x32xf32>
    %135 = vector.extract_strided_slice %132 {offsets = [0, 96], sizes = [16, 32], strides = [1, 1]} : vector<16x224xf32> to vector<16x32xf32>
    %136 = vector.extract_strided_slice %132 {offsets = [0, 128], sizes = [16, 64], strides = [1, 1]} : vector<16x224xf32> to vector<16x64xf32>
    %137 = vector.extract_strided_slice %132 {offsets = [0, 192], sizes = [16, 32], strides = [1, 1]} : vector<16x224xf32> to vector<16x32xf32>
    %138 = arith.mulf %133, %4 : vector<16x64xf32>
    %139 = arith.mulf %136, %5 : vector<16x64xf32>
    %140 = arith.addf %138, %139 : vector<16x64xf32>
    %cst_44 = arith.constant 2.500000e-01 : f32
    %141 = vector.broadcast %cst_44 : f32 to vector<16x64xf32>
    %142 = arith.mulf %140, %141 : vector<16x64xf32>
    %143 = arith.mulf %134, %6 : vector<16x32xf32>
    %144 = arith.mulf %137, %7 : vector<16x32xf32>
    %145 = arith.addf %143, %144 : vector<16x32xf32>
    %146 = vector.extract_strided_slice %142 {offsets = [0, 0], sizes = [16, 16], strides = [1, 1]} : vector<16x64xf32> to vector<16x16xf32>
    %147 = vector.extract_strided_slice %142 {offsets = [0, 16], sizes = [16, 16], strides = [1, 1]} : vector<16x64xf32> to vector<16x16xf32>
    %148 = vector.extract_strided_slice %142 {offsets = [0, 32], sizes = [16, 16], strides = [1, 1]} : vector<16x64xf32> to vector<16x16xf32>
    %149 = vector.extract_strided_slice %142 {offsets = [0, 48], sizes = [16, 16], strides = [1, 1]} : vector<16x64xf32> to vector<16x16xf32>
    %150 = tpu.concatenate %146, %147, %148, %149 in 0 : vector<16x16xf32>, vector<16x16xf32>, vector<16x16xf32>, vector<16x16xf32> -> vector<64x16xf32>
    %151 = vector.extract_strided_slice %145 {offsets = [0, 0], sizes = [16, 16], strides = [1, 1]} : vector<16x32xf32> to vector<16x16xf32>
    %152 = vector.extract_strided_slice %145 {offsets = [0, 16], sizes = [16, 16], strides = [1, 1]} : vector<16x32xf32> to vector<16x16xf32>
    %153 = tpu.concatenate %151, %152 in 0 : vector<16x16xf32>, vector<16x16xf32> -> vector<32x16xf32>
    %154 = vector.extract_strided_slice %135 {offsets = [0, 0], sizes = [16, 16], strides = [1, 1]} : vector<16x32xf32> to vector<16x16xf32>
    %155 = vector.extract_strided_slice %135 {offsets = [0, 16], sizes = [16, 16], strides = [1, 1]} : vector<16x32xf32> to vector<16x16xf32>
    %156 = tpu.concatenate %154, %155 in 0 : vector<16x16xf32>, vector<16x16xf32> -> vector<32x16xf32>
    %cst_45 = arith.constant dense<0.000000e+00> : vector<64x32xf32>
    %157 = tpu.matmul %150, %153, %cst_45 {dimension_numbers = #tpu.dot_dimension_numbers<[1], [1], [0], [0], [0, 0, 1, 0], [], []>} : vector<64x16xf32>, vector<32x16xf32>, vector<64x32xf32> -> vector<64x32xf32>
    %158 = arith.addf %157, %8 : vector<64x32xf32>
    %cst_46 = arith.constant dense<0xFF800000> : vector<64xf32>
    %159 = vector.multi_reduction <maximumf>, %158, %cst_46 [1] : vector<64x32xf32> to vector<64xf32>
    %160 = vector.shape_cast %159 : vector<64xf32> to vector<64x1xf32>
    %161 = vector.broadcast %160 : vector<64x1xf32> to vector<64x32xf32>
    %162 = arith.subf %158, %161 : vector<64x32xf32>
    %163 = math.exp %162 : vector<64x32xf32>
    %cst_47 = arith.constant dense<0.000000e+00> : vector<64xf32>
    %164 = vector.multi_reduction <add>, %163, %cst_47 [1] : vector<64x32xf32> to vector<64xf32>
    %165 = vector.shape_cast %164 : vector<64xf32> to vector<64x1xf32>
    %cst_48 = arith.constant dense<0.000000e+00> : vector<64x16xf32>
    %166 = tpu.matmul %163, %156, %cst_48 {dimension_numbers = #tpu.dot_dimension_numbers<[1], [0], [0], [1], [0, 0, 1, 1], [], []>} : vector<64x32xf32>, vector<32x16xf32>, vector<64x16xf32> -> vector<64x16xf32>
    %167 = tpu.reciprocal %165 {approx = true} : vector<64x1xf32> -> vector<64x1xf32>
    %168 = vector.broadcast %167 : vector<64x1xf32> to vector<64x16xf32>
    %169 = arith.mulf %166, %168 : vector<64x16xf32>
    %170 = vector.extract_strided_slice %169 {offsets = [0, 0], sizes = [16, 16], strides = [1, 1]} : vector<64x16xf32> to vector<16x16xf32>
    %171 = vector.extract_strided_slice %169 {offsets = [16, 0], sizes = [16, 16], strides = [1, 1]} : vector<64x16xf32> to vector<16x16xf32>
    %172 = vector.extract_strided_slice %169 {offsets = [32, 0], sizes = [16, 16], strides = [1, 1]} : vector<64x16xf32> to vector<16x16xf32>
    %173 = vector.extract_strided_slice %169 {offsets = [48, 0], sizes = [16, 16], strides = [1, 1]} : vector<64x16xf32> to vector<16x16xf32>
    %174 = tpu.concatenate %170, %171, %172, %173 in 1 : vector<16x16xf32>, vector<16x16xf32>, vector<16x16xf32>, vector<16x16xf32> -> vector<16x64xf32>
    %175 = vector.extract_strided_slice %115 {offsets = [0, 0], sizes = [64, 32], strides = [1, 1]} : vector<64x64xf32> to vector<64x32xf32>
    %cst_49 = arith.constant dense<0.000000e+00> : vector<16x32xf32>
    %176 = tpu.matmul %174, %175, %cst_49 {dimension_numbers = #tpu.dot_dimension_numbers<[1], [0], [0], [1], [0, 0, 1, 1], [], []>} : vector<16x64xf32>, vector<64x32xf32>, vector<16x32xf32> -> vector<16x32xf32>
    %177 = arith.addf %111, %176 : vector<16x32xf32>
    %178 = vector.extract_strided_slice %9 {offsets = [3, 0], sizes = [1, 32], strides = [1, 1]} : vector<5x32xf32> to vector<1x32xf32>
    %179 = arith.mulf %177, %177 : vector<16x32xf32>
    %cst_50 = arith.constant dense<0.000000e+00> : vector<16xf32>
    %180 = vector.multi_reduction <add>, %179, %cst_50 [1] : vector<16x32xf32> to vector<16xf32>
    %181 = vector.shape_cast %180 : vector<16xf32> to vector<16x1xf32>
    %cst_51 = arith.constant 3.200000e+01 : f32
    %182 = vector.broadcast %cst_51 : f32 to vector<16x1xf32>
    %183 = arith.divf %181, %182 : vector<16x1xf32>
    %cst_52 = arith.constant 9.99999997E-7 : f32
    %184 = vector.broadcast %cst_52 : f32 to vector<16x1xf32>
    %185 = arith.addf %183, %184 : vector<16x1xf32>
    %186 = math.rsqrt %185 : vector<16x1xf32>
    %187 = vector.broadcast %186 : vector<16x1xf32> to vector<16x32xf32>
    %188 = arith.mulf %177, %187 : vector<16x32xf32>
    %cst_53 = arith.constant 1.000000e+00 : f32
    %189 = vector.broadcast %cst_53 : f32 to vector<1x32xf32>
    %190 = arith.addf %189, %178 : vector<1x32xf32>
    %191 = vector.broadcast %190 : vector<1x32xf32> to vector<16x32xf32>
    %192 = arith.mulf %188, %191 : vector<16x32xf32>
    %193 = vector.extract_strided_slice %113 {offsets = [0, 224], sizes = [32, 128], strides = [1, 1]} : vector<32x352xf32> to vector<32x128xf32>
    %cst_54 = arith.constant dense<0.000000e+00> : vector<16x128xf32>
    %194 = tpu.matmul %192, %193, %cst_54 {dimension_numbers = #tpu.dot_dimension_numbers<[1], [0], [0], [1], [0, 0, 1, 1], [], []>} : vector<16x32xf32>, vector<32x128xf32>, vector<16x128xf32> -> vector<16x128xf32>
    %195 = vector.extract_strided_slice %194 {offsets = [0, 0], sizes = [16, 64], strides = [1, 1]} : vector<16x128xf32> to vector<16x64xf32>
    %196 = arith.mulf %195, %195 : vector<16x64xf32>
    %197 = arith.mulf %195, %196 : vector<16x64xf32>
    %cst_55 = arith.constant 4.471500e-02 : f32
    %198 = vector.broadcast %cst_55 : f32 to vector<16x64xf32>
    %199 = arith.mulf %198, %197 : vector<16x64xf32>
    %200 = arith.addf %195, %199 : vector<16x64xf32>
    %cst_56 = arith.constant 0.797884583 : f32
    %201 = vector.broadcast %cst_56 : f32 to vector<16x64xf32>
    %202 = arith.mulf %201, %200 : vector<16x64xf32>
    %203 = math.tanh %202 : vector<16x64xf32>
    %cst_57 = arith.constant 1.000000e+00 : f32
    %204 = vector.broadcast %cst_57 : f32 to vector<16x64xf32>
    %205 = arith.addf %204, %203 : vector<16x64xf32>
    %cst_58 = arith.constant 5.000000e-01 : f32
    %206 = vector.broadcast %cst_58 : f32 to vector<16x64xf32>
    %207 = arith.mulf %206, %205 : vector<16x64xf32>
    %208 = arith.mulf %195, %207 : vector<16x64xf32>
    %209 = vector.extract_strided_slice %194 {offsets = [0, 64], sizes = [16, 64], strides = [1, 1]} : vector<16x128xf32> to vector<16x64xf32>
    %210 = arith.mulf %208, %209 : vector<16x64xf32>
    %211 = vector.extract_strided_slice %115 {offsets = [0, 32], sizes = [64, 32], strides = [1, 1]} : vector<64x64xf32> to vector<64x32xf32>
    %cst_59 = arith.constant dense<0.000000e+00> : vector<16x32xf32>
    %212 = tpu.matmul %210, %211, %cst_59 {dimension_numbers = #tpu.dot_dimension_numbers<[1], [0], [0], [1], [0, 0, 1, 1], [], []>} : vector<16x64xf32>, vector<64x32xf32>, vector<16x32xf32> -> vector<16x32xf32>
    %213 = arith.addf %177, %212 : vector<16x32xf32>
    %214 = vector.extract_strided_slice %9 {offsets = [4, 0], sizes = [1, 32], strides = [1, 1]} : vector<5x32xf32> to vector<1x32xf32>
    %215 = arith.mulf %213, %213 : vector<16x32xf32>
    %cst_60 = arith.constant dense<0.000000e+00> : vector<16xf32>
    %216 = vector.multi_reduction <add>, %215, %cst_60 [1] : vector<16x32xf32> to vector<16xf32>
    %217 = vector.shape_cast %216 : vector<16xf32> to vector<16x1xf32>
    %cst_61 = arith.constant 3.200000e+01 : f32
    %218 = vector.broadcast %cst_61 : f32 to vector<16x1xf32>
    %219 = arith.divf %217, %218 : vector<16x1xf32>
    %cst_62 = arith.constant 9.99999997E-7 : f32
    %220 = vector.broadcast %cst_62 : f32 to vector<16x1xf32>
    %221 = arith.addf %219, %220 : vector<16x1xf32>
    %222 = math.rsqrt %221 : vector<16x1xf32>
    %223 = vector.broadcast %222 : vector<16x1xf32> to vector<16x32xf32>
    %224 = arith.mulf %213, %223 : vector<16x32xf32>
    %cst_63 = arith.constant 1.000000e+00 : f32
    %225 = vector.broadcast %cst_63 : f32 to vector<1x32xf32>
    %226 = arith.addf %225, %214 : vector<1x32xf32>
    %227 = vector.broadcast %226 : vector<1x32xf32> to vector<16x32xf32>
    %228 = arith.mulf %224, %227 : vector<16x32xf32>
    %c0_64 = arith.constant 0 : index
    %c0_65 = arith.constant 0 : index
    %229 = vector.load %arg6[%c0_64, %c0_65] : memref<16x32xf32, #tpu.memory_space<vmem>>, vector<16x32xf32>
    tpu.vector_store %arg6[%c0_64, %c0_65], %228 {strides = array<i32>} : memref<16x32xf32, #tpu.memory_space<vmem>>, vector<16x32xf32>,
    return
  }
}

</mosaic_0001>

<llo_original>
// kernel: tile.31
$region0: #{tile.31}
  %s0 = inlined_call_operand.vmem [shape: f32[16,4,16], index: 0, kind: input, shape index: {}]
  %s1 = inlined_call_operand.vmem [shape: f32[16,64], index: 1, kind: output, shape index: {}]
  $region1: #{tile.31} parent=0
    #allocation0 [shape = 'u8[65536]{0}', space=vmem, size = 0x10000, scoped, tag = 'scoped mem for input reshape']
    %s3 = ssub.s32 16, 1
    %s4 = scalar_lea.vmem %s0, 60
    %v5 = vld [vmem:[%s4] sm:%s3]
    %s6 = scalar_lea.vmem [#allocation0], 120
    %7 = vst [vmem:[%s6] sm:%s3] %v5
    %s8 = scalar_lea.vmem %s0, 56
    %v9 = vld [vmem:[%s8] sm:%s3]
    %s10 = scalar_lea.vmem [#allocation0], 112
    %11 = vst [vmem:[%s10] sm:%s3] %v9
    %s12 = scalar_lea.vmem %s0, 52
    %v13 = vld [vmem:[%s12] sm:%s3]
    %s14 = scalar_lea.vmem [#allocation0], 104
    %15 = vst [vmem:[%s14] sm:%s3] %v13
    %s16 = scalar_lea.vmem %s0, 48
    %v17 = vld [vmem:[%s16] sm:%s3]
    %s18 = scalar_lea.vmem [#allocation0], 96
    %19 = vst [vmem:[%s18] sm:%s3] %v17
    %s20 = scalar_lea.vmem %s0, 44
    %v21 = vld [vmem:[%s20] sm:%s3]
    %s22 = scalar_lea.vmem [#allocation0], 88
    %23 = vst [vmem:[%s22] sm:%s3] %v21
    %s24 = scalar_lea.vmem %s0, 40
    %v25 = vld [vmem:[%s24] sm:%s3]
    %s26 = scalar_lea.vmem [#allocation0], 80
    %27 = vst [vmem:[%s26] sm:%s3] %v25
    %s28 = scalar_lea.vmem %s0, 36
    %v29 = vld [vmem:[%s28] sm:%s3]
    %s30 = scalar_lea.vmem [#allocation0], 72
    %31 = vst [vmem:[%s30] sm:%s3] %v29
    %s32 = scalar_lea.vmem %s0, 32
    %v33 = vld [vmem:[%s32] sm:%s3]
    %s34 = scalar_lea.vmem [#allocation0], 64
    %35 = vst [vmem:[%s34] sm:%s3] %v33
    %s36 = scalar_lea.vmem %s0, 28
    %v37 = vld [vmem:[%s36] sm:%s3]
    %s38 = scalar_lea.vmem [#allocation0], 56
    %39 = vst [vmem:[%s38] sm:%s3] %v37
    %s40 = scalar_lea.vmem %s0, 24
    %v41 = vld [vmem:[%s40] sm:%s3]
    %s42 = scalar_lea.vmem [#allocation0], 48
    %43 = vst [vmem:[%s42] sm:%s3] %v41
    %s44 = scalar_lea.vmem %s0, 20
    %v45 = vld [vmem:[%s44] sm:%s3]
    %s46 = scalar_lea.vmem [#allocation0], 40
    %47 = vst [vmem:[%s46] sm:%s3] %v45
    %s48 = scalar_lea.vmem %s0, 16
    %v49 = vld [vmem:[%s48] sm:%s3]
    %s50 = scalar_lea.vmem [#allocation0], 32
    %51 = vst [vmem:[%s50] sm:%s3] %v49
    %s52 = scalar_lea.vmem %s0, 12
    %v53 = vld [vmem:[%s52] sm:%s3]
    %s54 = scalar_lea.vmem [#allocation0], 24
    %55 = vst [vmem:[%s54] sm:%s3] %v53
    %s56 = scalar_lea.vmem %s0, 8
    %v57 = vld [vmem:[%s56] sm:%s3]
    %s58 = scalar_lea.vmem [#allocation0], 16
    %59 = vst [vmem:[%s58] sm:%s3] %v57
    %s60 = scalar_lea.vmem %s0, 4
    %v61 = vld [vmem:[%s60] sm:%s3]
    %s62 = scalar_lea.vmem [#allocation0], 8
    %63 = vst [vmem:[%s62] sm:%s3] %v61
    %v64 = vld [vmem:[%s0] sm:%s3]
    %65 = vst [vmem:[#allocation0] sm:%s3] %v64
    %v66 = vld [vmem:[#allocation0] ss:$8 sm:$0xf]
    %v67 = vld [vmem:[#allocation0] ss:$8 sm:$0xf0]
    %vm68 = vcmask 1047556
    %v69 = vsel %vm68, %v67, %v66
    %vm70 = vcmask 130048
    %71 = vst.msk [vmem:[%s1] sm:$0xff] %vm70, %v69
    %s72 = scalar_lea.vmem [#allocation0], 64
    %v73 = vld [vmem:[%s72] ss:$8 sm:$0xf]
    %s74 = scalar_lea.vmem [#allocation0], 64
    %v75 = vld [vmem:[%s74] ss:$8 sm:$0xf0]
    %vm76 = vcmask 1047556
    %v77 = vsel %vm76, %v75, %v73
    %vm78 = vcmask 130048
    %s79 = scalar_lea.vmem %s1, 8
    %80 = vst.msk [vmem:[%s79] sm:$0xff] %vm78, %v77
    %s81 = scalar_lea.vmem [#allocation0], 3
    %v82 = vld [vmem:[%s81] ss:$8 sm:$0xf]
    %s83 = scalar_lea.vmem [#allocation0], 3
    %v84 = vld [vmem:[%s83] ss:$8 sm:$0xf0]
    %vm85 = vcmask 1047556
    %v86 = vsel %vm85, %v84, %v82
    %87 = vrot.lane.b32.xlu0 %v86, 48
    %v88 = vpop.permute.xlu0 %87
    %vm89 = vcmask 523648
    %90 = vst.msk [vmem:[%s1] sm:$0xff] %vm89, %v88
    %s91 = scalar_lea.vmem [#allocation0], 67
    %v92 = vld [vmem:[%s91] ss:$8 sm:$0xf]
    %s93 = scalar_lea.vmem [#allocation0], 67
    %v94 = vld [vmem:[%s93] ss:$8 sm:$0xf0]
    %vm95 = vcmask 1047556
    %v96 = vsel %vm95, %v94, %v92
    %97 = vrot.lane.b32.xlu0 %v96, 48
    %v98 = vpop.permute.xlu0 %97
    %vm99 = vcmask 523648
    %s100 = scalar_lea.vmem %s1, 8
    %101 = vst.msk [vmem:[%s100] sm:$0xff] %vm99, %v98
    %s102 = scalar_lea.vmem [#allocation0], 2
    %v103 = vld [vmem:[%s102] ss:$8 sm:$0xf]
    %s104 = scalar_lea.vmem [#allocation0], 2
    %v105 = vld [vmem:[%s104] ss:$8 sm:$0xf0]
    %vm106 = vcmask 1047556
    %v107 = vsel %vm106, %v105, %v103
    %108 = vrot.lane.b32.xlu0 %v107, 32
    %v109 = vpop.permute.xlu0 %108
    %vm110 = vcmask 392448
    %111 = vst.msk [vmem:[%s1] sm:$0xff] %vm110, %v109
    %s112 = scalar_lea.vmem [#allocation0], 66
    %v113 = vld [vmem:[%s112] ss:$8 sm:$0xf]
    %s114 = scalar_lea.vmem [#allocation0], 66
    %v115 = vld [vmem:[%s114] ss:$8 sm:$0xf0]
    %vm116 = vcmask 1047556
    %v117 = vsel %vm116, %v115, %v113
    %118 = vrot.lane.b32.xlu0 %v117, 32
    %v119 = vpop.permute.xlu0 %118
    %vm120 = vcmask 392448
    %s121 = scalar_lea.vmem %s1, 8
    %122 = vst.msk [vmem:[%s121] sm:$0xff] %vm120, %v119
    %s123 = scalar_lea.vmem [#allocation0], 1
    %v124 = vld [vmem:[%s123] ss:$8 sm:$0xf]
    %s125 = scalar_lea.vmem [#allocation0], 1
    %v126 = vld [vmem:[%s125] ss:$8 sm:$0xf0]
    %vm127 = vcmask 1047556
    %v128 = vsel %vm127, %v126, %v124
    %129 = vrot.lane.b32.xlu0 %v128, 16
    %v130 = vpop.permute.xlu0 %129
    %vm131 = vcmask 261248
    %132 = vst.msk [vmem:[%s1] sm:$0xff] %vm131, %v130
    %s133 = scalar_lea.vmem [#allocation0], 65
    %v134 = vld [vmem:[%s133] ss:$8 sm:$0xf]
    %s135 = scalar_lea.vmem [#allocation0], 65
    %v136 = vld [vmem:[%s135] ss:$8 sm:$0xf0]
    %vm137 = vcmask 1047556
    %v138 = vsel %vm137, %v136, %v134
    %139 = vrot.lane.b32.xlu0 %v138, 16
    %v140 = vpop.permute.xlu0 %139
    %vm141 = vcmask 261248
    %s142 = scalar_lea.vmem %s1, 8
    %143 = vst.msk [vmem:[%s142] sm:$0xff] %vm141, %v140

// kernel: tile.39
$region0: #{tile.39}
  %s0 = inlined_call_operand.vmem [shape: f32[16,2,16], index: 0, kind: input, shape index: {}]
  %s1 = inlined_call_operand.vmem [shape: f32[16,32], index: 1, kind: output, shape index: {}]
  $region1: #{tile.39} parent=0
    #allocation0 [shape = 'u8[65536]{0}', space=vmem, size = 0x10000, scoped, tag = 'scoped mem for input reshape']
    %s3 = ssub.s32 4, 1
    %s4 = scalar_lea.vmem %s0, 30
    %v5 = vld [vmem:[%s4] sm:%s3]
    %s6 = scalar_lea.vmem [#allocation0], 120
    %7 = vst [vmem:[%s6] sm:%s3] %v5
    %s8 = scalar_lea.vmem %s0, 28
    %v9 = vld [vmem:[%s8] sm:%s3]
    %s10 = scalar_lea.vmem [#allocation0], 112
    %11 = vst [vmem:[%s10] sm:%s3] %v9
    %s12 = scalar_lea.vmem %s0, 26
    %v13 = vld [vmem:[%s12] sm:%s3]
    %s14 = scalar_lea.vmem [#allocation0], 104
    %15 = vst [vmem:[%s14] sm:%s3] %v13
    %s16 = scalar_lea.vmem %s0, 24
    %v17 = vld [vmem:[%s16] sm:%s3]
    %s18 = scalar_lea.vmem [#allocation0], 96
    %19 = vst [vmem:[%s18] sm:%s3] %v17
    %s20 = scalar_lea.vmem %s0, 22
    %v21 = vld [vmem:[%s20] sm:%s3]
    %s22 = scalar_lea.vmem [#allocation0], 88
    %23 = vst [vmem:[%s22] sm:%s3] %v21
    %s24 = scalar_lea.vmem %s0, 20
    %v25 = vld [vmem:[%s24] sm:%s3]
    %s26 = scalar_lea.vmem [#allocation0], 80
    %27 = vst [vmem:[%s26] sm:%s3] %v25
    %s28 = scalar_lea.vmem %s0, 18
    %v29 = vld [vmem:[%s28] sm:%s3]
    %s30 = scalar_lea.vmem [#allocation0], 72
    %31 = vst [vmem:[%s30] sm:%s3] %v29
    %s32 = scalar_lea.vmem %s0, 16
    %v33 = vld [vmem:[%s32] sm:%s3]
    %s34 = scalar_lea.vmem [#allocation0], 64
    %35 = vst [vmem:[%s34] sm:%s3] %v33
    %s36 = scalar_lea.vmem %s0, 14
    %v37 = vld [vmem:[%s36] sm:%s3]
    %s38 = scalar_lea.vmem [#allocation0], 56
    %39 = vst [vmem:[%s38] sm:%s3] %v37
    %s40 = scalar_lea.vmem %s0, 12
    %v41 = vld [vmem:[%s40] sm:%s3]
    %s42 = scalar_lea.vmem [#allocation0], 48
    %43 = vst [vmem:[%s42] sm:%s3] %v41
    %s44 = scalar_lea.vmem %s0, 10
    %v45 = vld [vmem:[%s44] sm:%s3]
    %s46 = scalar_lea.vmem [#allocation0], 40
    %47 = vst [vmem:[%s46] sm:%s3] %v45
    %s48 = scalar_lea.vmem %s0, 8
    %v49 = vld [vmem:[%s48] sm:%s3]
    %s50 = scalar_lea.vmem [#allocation0], 32
    %51 = vst [vmem:[%s50] sm:%s3] %v49
    %s52 = scalar_lea.vmem %s0, 6
    %v53 = vld [vmem:[%s52] sm:%s3]
    %s54 = scalar_lea.vmem [#allocation0], 24
    %55 = vst [vmem:[%s54] sm:%s3] %v53
    %s56 = scalar_lea.vmem %s0, 4
    %v57 = vld [vmem:[%s56] sm:%s3]
    %s58 = scalar_lea.vmem [#allocation0], 16
    %59 = vst [vmem:[%s58] sm:%s3] %v57
    %s60 = scalar_lea.vmem %s0, 2
    %v61 = vld [vmem:[%s60] sm:%s3]
    %s62 = scalar_lea.vmem [#allocation0], 8
    %63 = vst [vmem:[%s62] sm:%s3] %v61
    %v64 = vld [vmem:[%s0] sm:%s3]
    %65 = vst [vmem:[#allocation0] sm:%s3] %v64
    %v66 = vld [vmem:[#allocation0] ss:$8 sm:$0xf]
    %v67 = vld [vmem:[#allocation0] ss:$8 sm:$0xf0]
    %vm68 = vcmask 1047556
    %v69 = vsel %vm68, %v67, %v66
    %vm70 = vcmask 130048
    %71 = vst.msk [vmem:[%s1] sm:$0xff] %vm70, %v69
    %s72 = scalar_lea.vmem [#allocation0], 64
    %v73 = vld [vmem:[%s72] ss:$8 sm:$0xf]
    %s74 = scalar_lea.vmem [#allocation0], 64
    %v75 = vld [vmem:[%s74] ss:$8 sm:$0xf0]
    %vm76 = vcmask 1047556
    %v77 = vsel %vm76, %v75, %v73
    %vm78 = vcmask 130048
    %s79 = scalar_lea.vmem %s1, 8
    %80 = vst.msk [vmem:[%s79] sm:$0xff] %vm78, %v77
    %s81 = scalar_lea.vmem [#allocation0], 1
    %v82 = vld [vmem:[%s81] ss:$8 sm:$0xf]
    %s83 = scalar_lea.vmem [#allocation0], 1
    %v84 = vld [vmem:[%s83] ss:$8 sm:$0xf0]
    %vm85 = vcmask 1047556
    %v86 = vsel %vm85, %v84, %v82
    %87 = vrot.lane.b32.xlu0 %v86, 16
    %v88 = vpop.permute.xlu0 %87
    %vm89 = vcmask 261248
    %90 = vst.msk [vmem:[%s1] sm:$0xff] %vm89, %v88
    %s91 = scalar_lea.vmem [#allocation0], 65
    %v92 = vld [vmem:[%s91] ss:$8 sm:$0xf]
    %s93 = scalar_lea.vmem [#allocation0], 65
    %v94 = vld [vmem:[%s93] ss:$8 sm:$0xf0]
    %vm95 = vcmask 1047556
    %v96 = vsel %vm95, %v94, %v92
    %97 = vrot.lane.b32.xlu0 %v96, 16
    %v98 = vpop.permute.xlu0 %97
    %vm99 = vcmask 261248
    %s100 = scalar_lea.vmem %s1, 8
    %101 = vst.msk [vmem:[%s100] sm:$0xff] %vm99, %v98

// kernel: tile.45
$region0: #{tile.45}
  %s0 = inlined_call_operand.vmem [shape: s32[2,8], index: 0, kind: input, shape index: {}]
  %s1 = inlined_call_operand.vmem [shape: s32[16], index: 1, kind: output, shape index: {}]
  $region1: #{tile.45} parent=0
    #allocation0 [shape = 'u8[4096]{0}', space=vmem, size = 0x1000, scoped, tag = 'scoped mem for output reshape']
    #allocation1 [shape = 'u8[4096]{0}', space=vmem, size = 0x1000, scoped, tag = 'scoped mem for input reshape']
    %s3 = ssub.s32 4, 1
    %v4 = vld [vmem:[%s0] sm:%s3]
    %5 = vst [vmem:[#allocation1] sm:%s3] %v4
    %v6 = vld [vmem:[#allocation1] sm:$0x1]
    %vm7 = vcmask 64512
    %8 = vst.msk [vmem:[#allocation0] sm:$0x1] %vm7, %v6
    %s9 = scalar_lea.vmem [#allocation1], 1
    %v10 = vld [vmem:[%s9] sm:$0x1]
    %11 = vrot.lane.b32.xlu0 %v10, 8
    %v12 = vpop.permute.xlu0 %11
    %vm13 = vcmask 130112
    %14 = vst.msk [vmem:[#allocation0] sm:$0x1] %vm13, %v12
    %s16 = ssub.s32 2, 1
    %v17 = vld [vmem:[#allocation0] sm:%s16]
    %s19 = ssub.s32 2, 1
    %20 = vst [vmem:[%s1] sm:%s19] %v17

// kernel: tile.46
$region0: #{tile.46}
  #allocation0 [shape = 's32[1]{0}', space=sflag, size = 0x4, scoped, tag = 'scoped memory for tile.46']
  %s0 = inlined_call_operand.vmem [shape: s32[16], index: 0, kind: input, shape index: {}]
  %s1 = inlined_call_operand.vmem [shape: s32[4,16], index: 1, kind: output, shape index: {}]
  // Predicated region
  $region2: #{tile.46} parent=0 // pred_check
    _
  $region3: #{tile.46} parent=0 // pred_check_branch
    %3 = sbr.rel (0) target = $region5
  $region4: #{tile.46} parent=0 // pred_region
    _
  $region5: #{tile.46} parent=0 // pred_fallthru
    _
  %v4 = vld [vmem:[%s0] ss:$0 sm:$0xff]
  %5 = vst [vmem:[%s1] sm:$0xf] %v4

// kernel: eq.15
$region0: #{eq.15}
  %s0 = inlined_call_operand.vmem [shape: s32[4,16], index: 0, kind: input, shape index: {}]
  %s1 = inlined_call_operand.vmem [shape: s32[64], index: 1, kind: output, shape index: {}]
  $region1: #{eq.15} parent=0
    #allocation0 [shape = 'u8[4096]{0}', space=vmem, size = 0x1000, scoped, tag = 'scoped mem for output reshape']
    #allocation1 [shape = 'u8[4096]{0}', space=vmem, size = 0x1000, scoped, tag = 'scoped mem for input reshape']
    %s3 = ssub.s32 16, 1
    %v4 = vld [vmem:[%s0] sm:%s3]
    %5 = vst [vmem:[#allocation1] sm:%s3] %v4
    %v6 = vld [vmem:[#allocation1] sm:$0x1]
    %vm7 = vcmask 130048
    %8 = vst.msk [vmem:[#allocation0] sm:$0x1] %vm7, %v6
    %s9 = scalar_lea.vmem [#allocation1], 3
    %v10 = vld [vmem:[%s9] sm:$0x1]
    %11 = vrot.lane.b32.xlu0 %v10, 48
    %v12 = vpop.permute.xlu0 %11
    %vm13 = vcmask 523648
    %14 = vst.msk [vmem:[#allocation0] sm:$0x1] %vm13, %v12
    %s15 = scalar_lea.vmem [#allocation1], 2
    %v16 = vld [vmem:[%s15] sm:$0x1]
    %17 = vrot.lane.b32.xlu0 %v16, 32
    %v18 = vpop.permute.xlu0 %17
    %vm19 = vcmask 392448
    %20 = vst.msk [vmem:[#allocation0] sm:$0x1] %vm19, %v18
    %s21 = scalar_lea.vmem [#allocation1], 1
    %v22 = vld [vmem:[%s21] sm:$0x1]
    %23 = vrot.lane.b32.xlu0 %v22, 16
    %v24 = vpop.permute.xlu0 %23
    %vm25 = vcmask 261248
    %26 = vst.msk [vmem:[#allocation0] sm:$0x1] %vm25, %v24
    %s28 = ssub.s32 2, 1
    %v29 = vld [vmem:[#allocation0] sm:%s28]
    %s31 = ssub.s32 2, 1
    %32 = vst [vmem:[%s1] sm:%s31] %v29

// kernel: tile.49
$region0: #{tile.49}
  #allocation0 [shape = 's32[1]{0}', space=sflag, size = 0x4, scoped, tag = 'scoped memory for tile.49']
  %s0 = inlined_call_operand.vmem [shape: s32[16], index: 0, kind: input, shape index: {}]
  %s1 = inlined_call_operand.vmem [shape: s32[2,16], index: 1, kind: output, shape index: {}]
  // Predicated region
  $region2: #{tile.49} parent=0 // pred_check
    _
  $region3: #{tile.49} parent=0 // pred_check_branch
    %3 = sbr.rel (0) target = $region5
  $region4: #{tile.49} parent=0 // pred_region
    _
  $region5: #{tile.49} parent=0 // pred_fallthru
    _
  %v4 = vld [vmem:[%s0] ss:$0 sm:$0xff]
  %5 = vst [vmem:[%s1] sm:$0x3] %v4

// kernel: eq.18
$region0: #{eq.18}
  %s0 = inlined_call_operand.vmem [shape: s32[2,16], index: 0, kind: input, shape index: {}]
  %s1 = inlined_call_operand.vmem [shape: s32[32], index: 1, kind: output, shape index: {}]
  $region1: #{eq.18} parent=0
    #allocation0 [shape = 'u8[4096]{0}', space=vmem, size = 0x1000, scoped, tag = 'scoped mem for output reshape']
    #allocation1 [shape = 'u8[4096]{0}', space=vmem, size = 0x1000, scoped, tag = 'scoped mem for input reshape']
    %s3 = ssub.s32 4, 1
    %v4 = vld [vmem:[%s0] sm:%s3]
    %5 = vst [vmem:[#allocation1] sm:%s3] %v4
    %v6 = vld [vmem:[#allocation1] sm:$0x1]
    %vm7 = vcmask 130048
    %8 = vst.msk [vmem:[#allocation0] sm:$0x1] %vm7, %v6
    %s9 = scalar_lea.vmem [#allocation1], 1
    %v10 = vld [vmem:[%s9] sm:$0x1]
    %11 = vrot.lane.b32.xlu0 %v10, 16
    %v12 = vpop.permute.xlu0 %11
    %vm13 = vcmask 261248
    %14 = vst.msk [vmem:[#allocation0] sm:$0x1] %vm13, %v12
    %s16 = ssub.s32 2, 1
    %v17 = vld [vmem:[#allocation0] sm:%s16]
    %s19 = ssub.s32 2, 1
    %20 = vst [vmem:[%s1] sm:%s19] %v17

// kernel: tile.52
$region0: #{tile.52}
  #allocation0 [shape = 's32[1]{0}', space=sflag, size = 0x4, scoped, tag = 'scoped memory for tile.52']
  %s0 = inlined_call_operand.vmem [shape: f32[16], index: 0, kind: input, shape index: {}]
  %s1 = inlined_call_operand.vmem [shape: f32[2,16], index: 1, kind: output, shape index: {}]
  // Predicated region
  $region2: #{tile.52} parent=0 // pred_check
    _
  $region3: #{tile.52} parent=0 // pred_check_branch
    %3 = sbr.rel (0) target = $region5
  $region4: #{tile.52} parent=0 // pred_region
    _
  $region5: #{tile.52} parent=0 // pred_fallthru
    _
  %v4 = vld [vmem:[%s0] ss:$0 sm:$0xff]
  %5 = vst [vmem:[%s1] sm:$0x3] %v4

// kernel: _lambda_.1
$region0: #{_lambda_.1}
  #allocation0 [shape = 'u32[]', space=smem, size = 0x4, offset = 0x4, fixed_abs, tag = 'smem constant byte address 0x4 - core index']
  #allocation1 [shape = 'u32[72,128]{1,0:T(1,128)}', space=vmem, size = 0x9000, scoped, tag = 'internal scratch']
  %s0 = inlined_call_operand.vmem [shape: f32[16,32], index: 0, kind: input, shape index: {}]
  %s1 = inlined_call_operand.vmem [shape: f32[16,192], index: 1, kind: input, shape index: {}]
  %s2 = inlined_call_operand.vmem [shape: f32[64,32], index: 2, kind: input, shape index: {}]
  %s3 = inlined_call_operand.vmem [shape: f32[2,32,352], index: 3, kind: input, shape index: {}]
  %s4 = inlined_call_operand.vmem [shape: f32[2,64,64], index: 4, kind: input, shape index: {}]
  %s5 = inlined_call_operand.vmem [shape: f32[5,32], index: 5, kind: input, shape index: {}]
  %s6 = inlined_call_operand.hbm [shape: f32[16,32], index: 6, kind: output, shape index: {}]
  %s7 = sld [smem:[#allocation0]]
  $region34: #{_lambda_.1} parent=0
    _
  %s9 = ssub.s32 1, %s7
  %s10 = scalar_select 0, %s9, %s7
  $region1: #{_lambda_.1} parent=0
    #allocation2 [shape = 'u8[8192]{0}', space=vmem, size = 0x2000, scoped, tag = 'output window, operand 0, single buffered']
    #allocation3 [shape = 's32[1]{0}', space=sflag, size = 0x4, scoped, tag = 'scoped memory for _lambda_.1']
    %11 = vsyncpa [#allocation3], 0
    // Predicated region
    $region2: #{_lambda_.1} parent=1 // pred_check
      _
    $region3: #{_lambda_.1} parent=1 // pred_check_branch
      %13 = sbr.rel (0) target = $region5
    $region4: #{_lambda_.1} parent=1 // pred_region
      _
    $region5: #{_lambda_.1} parent=1 // pred_fallthru
      _
    // Predicated region
    $region6: #{_lambda_.1} parent=1 // pred_check
      _
    $region7: #{_lambda_.1} parent=1 // pred_check_branch
      %15 = sbr.rel (0) target = $region9
    $region8: #{_lambda_.1} parent=1 // pred_region
      _
    $region9: #{_lambda_.1} parent=1 // pred_fallthru
      _
    // Predicated region
    $region10: #{_lambda_.1} parent=1 // pred_check
      _
    $region11: #{_lambda_.1} parent=1 // pred_check_branch
      %17 = sbr.rel (0) target = $region13
    $region12: #{_lambda_.1} parent=1 // pred_region
      _
    $region13: #{_lambda_.1} parent=1 // pred_fallthru
      _
    // Predicated region
    $region14: #{_lambda_.1} parent=1 // pred_check
      _
    $region15: #{_lambda_.1} parent=1 // pred_check_branch
      %19 = sbr.rel (0) target = $region17
    $region16: #{_lambda_.1} parent=1 // pred_region
      _
    $region17: #{_lambda_.1} parent=1 // pred_fallthru
      _
    // Predicated region
    $region18: #{_lambda_.1} parent=1 // pred_check
      _
    $region19: #{_lambda_.1} parent=1 // pred_check_branch
      %21 = sbr.rel (0) target = $region21
    $region20: #{_lambda_.1} parent=1 // pred_region
      _
    $region21: #{_lambda_.1} parent=1 // pred_fallthru
      _
    // Predicated region
    $region22: #{_lambda_.1} parent=1 // pred_check
      _
    $region23: #{_lambda_.1} parent=1 // pred_check_branch
      %23 = sbr.rel (0) target = $region25
    $region24: #{_lambda_.1} parent=1 // pred_region
      _
    $region25: #{_lambda_.1} parent=1 // pred_fallthru
      _
    %v24 = vld [vmem:[%s0] sm:$0xff]
    %v25 = vld [vmem:[%s0 + $0x8] sm:$0xff]
    %v26 = vmul.f32 %v24, 5.656854
    %v27 = vmul.f32 %v25, 5.656854
    %v28 = vld [vmem:[%s1] sm:$0xff]
    %v29 = vld [vmem:[%s1 + $0x8] sm:$0xff]
    %v30 = vld [vmem:[%s1 + $0x10] sm:$0xff]
    %v31 = vld [vmem:[%s1 + $0x18] sm:$0xff]
    %v32 = vld [vmem:[%s2] sm:$0xff]
    %v33 = vld [vmem:[%s2 + $0x8] sm:$0xff]
    %v34 = vld [vmem:[%s2 + $0x10] sm:$0xff]
    %v35 = vld [vmem:[%s2 + $0x18] sm:$0xff]
    %v36 = vld [vmem:[%s2 + $0x20] sm:$0xff]
    %v37 = vld [vmem:[%s2 + $0x28] sm:$0xff]
    %v38 = vld [vmem:[%s2 + $0x30] sm:$0xff]
    %v39 = vld [vmem:[%s2 + $0x38] sm:$0xff]
    %v40 = vld [vmem:[%s5] sm:$0x1f]
    %v41 = vld [vmem:[%s3] sm:$0xff]
    %v42 = vld [vmem:[%s3 + $0x8] sm:$0xff]
    %v43 = vld [vmem:[%s3 + $0x10] sm:$0xff]
    %v44 = vld [vmem:[%s3 + $0x18] sm:$0xff]
    %v45 = vld [vmem:[%s3 + $0x20] sm:$0xff]
    %v46 = vld [vmem:[%s3 + $0x28] sm:$0xff]
    %v47 = vld [vmem:[%s3 + $0x30] sm:$0xff]
    %v48 = vld [vmem:[%s3 + $0x38] sm:$0xff]
    %v49 = vld [vmem:[%s3 + $0x40] sm:$0xff]
    %v50 = vld [vmem:[%s3 + $0x48] sm:$0xff]
    %v51 = vld [vmem:[%s3 + $0x50] sm:$0xff]
    %v52 = vld [vmem:[%s3 + $0x58] sm:$0xff]
    %v53 = vld [vmem:[%s4] sm:$0xff]
    %v54 = vld [vmem:[%s4 + $0x8] sm:$0xff]
    %v55 = vld [vmem:[%s4 + $0x10] sm:$0xff]
    %v56 = vld [vmem:[%s4 + $0x18] sm:$0xff]
    %v57 = vld [vmem:[%s4 + $0x20] sm:$0xff]
    %v58 = vld [vmem:[%s4 + $0x28] sm:$0xff]
    %v59 = vld [vmem:[%s4 + $0x30] sm:$0xff]
    %v60 = vld [vmem:[%s4 + $0x38] sm:$0xff]
    %v61 = vmul.f32 %v26, %v26
    %v62 = vmul.f32 %v27, %v27
    %vm63 = vcmask 261120
    %v64 = vsel %vm63, %v61, 0.0
    %65 = vadd.xlane.f32.xlu0 %v64
    %v66 = vpop.xlane.xlu0 %65
    %v67 = vsel %vm63, %v62, 0.0
    %68 = vadd.xlane.f32.xlu0 %v67
    %v69 = vpop.xlane.xlu0 %68
    %v70 = vrcp.pop 32.0
    %v71 = vmul.f32 32.0, %v70
    %v72 = vsub.f32 1.0, %v71
    %v73 = vmul.f32 %v70, %v72
    %v74 = vadd.f32 %v70, %v73
    %vm75 = vweird.f32 %v70
    %v76 = vsel %vm75, %v70, %v74
    %v77 = vmul.f32 %v66, %v76
    %v78 = vmul.f32 %v69, %v76
    %v79 = vadd.f32 %v77, 1e-06
    %v80 = vadd.f32 %v78, 1e-06
    %v81 = vrsqrt.pop %v79
    %v82 = vmul.f32 %v81, %v79
    %v83 = vmul.f32 %v82, %v81
    %v84 = vmul.f32 0.5, %v83
    %v85 = vsub.f32 1.5, %v84
    %v86 = vmul.f32 %v81, %v85
    %vm87 = vweird.f32 %v79
    %vm88 = vweird.f32 %v81
    %vm89 = vmor %vm87, %vm88
    %v90 = vsel %vm89, %v81, %v86
    %v91 = vrsqrt.pop %v80
    %v92 = vmul.f32 %v91, %v80
    %v93 = vmul.f32 %v92, %v91
    %v94 = vmul.f32 0.5, %v93
    %v95 = vsub.f32 1.5, %v94
    %v96 = vmul.f32 %v91, %v95
    %vm97 = vweird.f32 %v80
    %vm98 = vweird.f32 %v91
    %vm99 = vmor %vm97, %vm98
    %v100 = vsel %vm99, %v91, %v96
    %v101 = vmul.f32 %v26, %v90
    %v102 = vmul.f32 %v27, %v100
    %v103 = vadd.f32 %v40, 1.0
    %v104 = vperm.slane %v103, 0
    %v105 = vmul.f32 %v101, %v104
    %v106 = vmul.f32 %v102, %v104
    %v108 = vsel %vm63, %v105, 0
    %v111 = vsel %vm63, %v106, 0
    %113 = vmatpush.msra.mxu0 0.0
    %114 = vmatpush.msra.mxu0 0.0
    %115 = vmatpush.msra.mxu0 0.0
    %116 = vmatpush.msra.mxu0 0.0
    %117 = vmatpush.msra.mxu0 0.0
    %118 = vmatpush.msra.mxu0 0.0
    %119 = vmatpush.msra.mxu0 0.0
    %120 = vmatpush.msra.mxu0 0.0
    %121 = vmatpush.msra.mxu0 0.0
    %122 = vmatpush.msra.mxu0 0.0
    %123 = vmatpush.msra.mxu0 0.0
    %124 = vmatpush.msra.mxu0 0.0
    %125 = vmatpush.msra.mxu0 %v50
    %126 = vmatpush.msra.mxu0 %v47
    %127 = vmatpush.msra.mxu0 %v44
    %128 = vmatpush.msra.mxu0 %v41
    %129 = vmatmul.f32.gmra.mxu0 %v108
    %v130 = vpop.f32.mrf.mxu0
    %v131 = vadd.f32 0.0, %v130
    %132 = vmatmul.f32.gmra.mxu0 %v111
    %v133 = vpop.f32.mrf.mxu0
    %v134 = vadd.f32 0.0, %v133
    %135 = vdwg.mxu0
    %136 = vmatpush.msra.mxu0 0.0
    %137 = vmatpush.msra.mxu0 0.0
    %138 = vmatpush.msra.mxu0 0.0
    %139 = vmatpush.msra.mxu0 0.0
    %140 = vmatpush.msra.mxu0 0.0
    %141 = vmatpush.msra.mxu0 0.0
    %142 = vmatpush.msra.mxu0 0.0
    %143 = vmatpush.msra.mxu0 0.0
    %144 = vmatpush.msra.mxu0 0.0
    %145 = vmatpush.msra.mxu0 0.0
    %146 = vmatpush.msra.mxu0 0.0
    %147 = vmatpush.msra.mxu0 0.0
    %148 = vmatpush.msra.mxu0 %v51
    %149 = vmatpush.msra.mxu0 %v48
    %150 = vmatpush.msra.mxu0 %v45
    %151 = vmatpush.msra.mxu0 %v42
    %152 = vmatmul.f32.gmra.mxu0 %v108
    %v153 = vpop.f32.mrf.mxu0
    %v154 = vadd.f32 0.0, %v153
    %155 = vmatmul.f32.gmra.mxu0 %v111
    %v156 = vpop.f32.mrf.mxu0
    %v157 = vadd.f32 0.0, %v156
    %158 = vdwg.mxu0
    %v159 = vmul.f32 %v131, %v28
    %v160 = vmul.f32 %v134, %v30
    %163 = vrot.lane.b32.xlu0 %v28, 64
    %v164 = vpop.permute.xlu0 %163
    %165 = vrot.lane.b32.xlu0 %v30, 64
    %v166 = vpop.permute.xlu0 %165
    %v169 = vmul.f32 %v154, %v164
    %v170 = vmul.f32 %v157, %v166
    %v171 = vadd.f32 %v159, %v169
    %v172 = vadd.f32 %v160, %v170
    %v173 = vmul.f32 %v171, 0.25
    %v174 = vmul.f32 %v172, 0.25
    %177 = vrot.lane.b32.xlu0 %v29, 64
    %v178 = vpop.permute.xlu0 %177
    %179 = vrot.lane.b32.xlu0 %v31, 64
    %v180 = vpop.permute.xlu0 %179
    %v183 = vmul.f32 %v131, %v178
    %v184 = vmul.f32 %v134, %v180
    %185 = vrot.lane.b32.xlu0 %v29, 32
    %v186 = vpop.permute.xlu0 %185
    %187 = vrot.lane.b32.xlu0 %v31, 32
    %v188 = vpop.permute.xlu0 %187
    %v191 = vmul.f32 %v154, %v186
    %v192 = vmul.f32 %v157, %v188
    %v193 = vadd.f32 %v183, %v191
    %v194 = vadd.f32 %v184, %v192
    %197 = vrot.lane.b32.xlu0 %v173, 112
    %v198 = vpop.permute.xlu0 %197
    %199 = vrot.lane.b32.xlu0 %v174, 112
    %v200 = vpop.permute.xlu0 %199
    %201 = vrot.lane.b32.xlu0 %v173, 96
    %v202 = vpop.permute.xlu0 %201
    %203 = vrot.lane.b32.xlu0 %v174, 96
    %v204 = vpop.permute.xlu0 %203
    %205 = vrot.lane.b32.xlu0 %v173, 80
    %v206 = vpop.permute.xlu0 %205
    %207 = vrot.lane.b32.xlu0 %v174, 80
    %v208 = vpop.permute.xlu0 %207
    %211 = vrot.lane.b32.xlu0 %v193, 112
    %v212 = vpop.permute.xlu0 %211
    %213 = vrot.lane.b32.xlu0 %v194, 112
    %v214 = vpop.permute.xlu0 %213
    %217 = vrot.lane.b32.xlu0 %v131, 112
    %v218 = vpop.permute.xlu0 %217
    %219 = vrot.lane.b32.xlu0 %v134, 112
    %v220 = vpop.permute.xlu0 %219
    %221 = vrot.lane.b32.xlu0 %v193, 64
    %v222 = vpop.permute.xlu0 %221
    %223 = vrot.lane.b32.xlu0 %v194, 64
    %v224 = vpop.permute.xlu0 %223
    %225 = vrot.lane.b32.xlu0 %v212, 64
    %v226 = vpop.permute.xlu0 %225
    %227 = vrot.lane.b32.xlu0 %v214, 64
    %v228 = vpop.permute.xlu0 %227
    %vm229 = vcmask 130048
    %v230 = vsel %vm229, %v173, 0
    %v232 = vsel %vm229, %v174, 0
    %v234 = vsel %vm229, %v198, 0
    %v236 = vsel %vm229, %v200, 0
    %v238 = vsel %vm229, %v202, 0
    %v240 = vsel %vm229, %v204, 0
    %v242 = vsel %vm229, %v206, 0
    %v244 = vsel %vm229, %v208, 0
    %v246 = vsel %vm229, %v222, 0
    %v248 = vsel %vm229, %v224, 0
    %v250 = vsel %vm229, %v226, 0
    %v252 = vsel %vm229, %v228, 0
    %254 = vmatpush.xpose.msra.mxu0 0.0
    %255 = vmatpush.xpose.msra.mxu0 0.0
    %256 = vmatpush.xpose.msra.mxu0 0.0
    %257 = vmatpush.xpose.msra.mxu0 0.0
    %258 = vmatpush.xpose.msra.mxu0 0.0
    %259 = vmatpush.xpose.msra.mxu0 0.0
    %260 = vmatpush.xpose.msra.mxu0 0.0
    %261 = vmatpush.xpose.msra.mxu0 0.0
    %262 = vmatpush.xpose.msra.mxu0 0.0
    %263 = vmatpush.xpose.msra.mxu0 0.0
    %264 = vmatpush.xpose.msra.mxu0 0.0
    %265 = vmatpush.xpose.msra.mxu0 0.0
    %266 = vmatpush.xpose.msra.mxu0 %v252
    %267 = vmatpush.xpose.msra.mxu0 %v250
    %268 = vmatpush.xpose.msra.mxu0 %v248
    %269 = vmatpush.xpose.msra.mxu0 %v246
    %270 = vmatmul.f32.gmra.mxu0 %v230
    %v271 = vpop.f32.mrf.mxu0
    %v272 = vadd.f32 %v32, %v271
    %273 = vmatmul.f32.gmra.mxu0 %v232
    %v274 = vpop.f32.mrf.mxu0
    %v275 = vadd.f32 %v33, %v274
    %276 = vmatmul.f32.gmra.mxu0 %v234
    %v277 = vpop.f32.mrf.mxu0
    %v278 = vadd.f32 %v34, %v277
    %279 = vmatmul.f32.gmra.mxu0 %v236
    %v280 = vpop.f32.mrf.mxu0
    %v281 = vadd.f32 %v35, %v280
    %282 = vmatmul.f32.gmra.mxu0 %v238
    %v283 = vpop.f32.mrf.mxu0
    %v284 = vadd.f32 %v36, %v283
    %285 = vmatmul.f32.gmra.mxu0 %v240
    %v286 = vpop.f32.mrf.mxu0
    %v287 = vadd.f32 %v37, %v286
    %288 = vmatmul.f32.gmra.mxu0 %v242
    %v289 = vpop.f32.mrf.mxu0
    %v290 = vadd.f32 %v38, %v289
    %291 = vmatmul.f32.gmra.mxu0 %v244
    %v292 = vpop.f32.mrf.mxu0
    %v293 = vadd.f32 %v39, %v292
    %294 = vdwg.mxu0
    %v295 = vsel %vm63, %v272, -inf
    %296 = vmax.xlane.f32.xlu0 %v295
    %v297 = vpop.xlane.xlu0 %296
    %v298 = vsel %vm63, %v275, -inf
    %299 = vmax.xlane.f32.xlu0 %v298
    %v300 = vpop.xlane.xlu0 %299
    %v301 = vsel %vm63, %v278, -inf
    %302 = vmax.xlane.f32.xlu0 %v301
    %v303 = vpop.xlane.xlu0 %302
    %v304 = vsel %vm63, %v281, -inf
    %305 = vmax.xlane.f32.xlu0 %v304
    %v306 = vpop.xlane.xlu0 %305
    %v307 = vsel %vm63, %v284, -inf
    %308 = vmax.xlane.f32.xlu0 %v307
    %v309 = vpop.xlane.xlu0 %308
    %v310 = vsel %vm63, %v287, -inf
    %311 = vmax.xlane.f32.xlu0 %v310
    %v312 = vpop.xlane.xlu0 %311
    %v313 = vsel %vm63, %v290, -inf
    %314 = vmax.xlane.f32.xlu0 %v313
    %v315 = vpop.xlane.xlu0 %314
    %v316 = vsel %vm63, %v293, -inf
    %317 = vmax.xlane.f32.xlu0 %v316
    %v318 = vpop.xlane.xlu0 %317
    %v319 = vsub.f32 %v272, %v297
    %v320 = vsub.f32 %v275, %v300
    %v321 = vsub.f32 %v278, %v303
    %v322 = vsub.f32 %v281, %v306
    %v323 = vsub.f32 %v284, %v309
    %v324 = vsub.f32 %v287, %v312
    %v325 = vsub.f32 %v290, %v315
    %v326 = vsub.f32 %v293, %v318
    %v327 = vmul.f32 %v319, 1.442695
    %v328 = vpow.pop %v327
    %v329 = vmul.f32 %v320, 1.442695
    %v330 = vpow.pop %v329
    %v331 = vmul.f32 %v321, 1.442695
    %v332 = vpow.pop %v331
    %v333 = vmul.f32 %v322, 1.442695
    %v334 = vpow.pop %v333
    %v335 = vmul.f32 %v323, 1.442695
    %v336 = vpow.pop %v335
    %v337 = vmul.f32 %v324, 1.442695
    %v338 = vpow.pop %v337
    %v339 = vmul.f32 %v325, 1.442695
    %v340 = vpow.pop %v339
    %v341 = vmul.f32 %v326, 1.442695
    %v342 = vpow.pop %v341
    %v343 = vsel %vm63, %v328, 0.0
    %344 = vadd.xlane.f32.xlu0 %v343
    %v345 = vpop.xlane.xlu0 %344
    %v346 = vsel %vm63, %v330, 0.0
    %347 = vadd.xlane.f32.xlu0 %v346
    %v348 = vpop.xlane.xlu0 %347
    %v349 = vsel %vm63, %v332, 0.0
    %350 = vadd.xlane.f32.xlu0 %v349
    %v351 = vpop.xlane.xlu0 %350
    %v352 = vsel %vm63, %v334, 0.0
    %353 = vadd.xlane.f32.xlu0 %v352
    %v354 = vpop.xlane.xlu0 %353
    %v355 = vsel %vm63, %v336, 0.0
    %356 = vadd.xlane.f32.xlu0 %v355
    %v357 = vpop.xlane.xlu0 %356
    %v358 = vsel %vm63, %v338, 0.0
    %359 = vadd.xlane.f32.xlu0 %v358
    %v360 = vpop.xlane.xlu0 %359
    %v361 = vsel %vm63, %v340, 0.0
    %362 = vadd.xlane.f32.xlu0 %v361
    %v363 = vpop.xlane.xlu0 %362
    %v364 = vsel %vm63, %v342, 0.0
    %365 = vadd.xlane.f32.xlu0 %v364
    %v366 = vpop.xlane.xlu0 %365
    %367 = vrot.lane.b32.xlu0 %v131, 32
    %v368 = vpop.permute.xlu0 %367
    %369 = vrot.lane.b32.xlu0 %v134, 32
    %v370 = vpop.permute.xlu0 %369
    %371 = vrot.lane.b32.xlu0 %v218, 32
    %v372 = vpop.permute.xlu0 %371
    %373 = vrot.lane.b32.xlu0 %v220, 32
    %v374 = vpop.permute.xlu0 %373
    %v380 = vsel %vm63, %v328, 0
    %v383 = vsel %vm63, %v330, 0
    %v386 = vsel %vm63, %v332, 0
    %v389 = vsel %vm63, %v334, 0
    %v392 = vsel %vm63, %v336, 0
    %v395 = vsel %vm63, %v338, 0
    %v398 = vsel %vm63, %v340, 0
    %v401 = vsel %vm63, %v342, 0
    %403 = vmatpush.msra.mxu0 0.0
    %404 = vmatpush.msra.mxu0 0.0
    %405 = vmatpush.msra.mxu0 0.0
    %406 = vmatpush.msra.mxu0 0.0
    %407 = vmatpush.msra.mxu0 0.0
    %408 = vmatpush.msra.mxu0 0.0
    %409 = vmatpush.msra.mxu0 0.0
    %410 = vmatpush.msra.mxu0 0.0
    %411 = vmatpush.msra.mxu0 0.0
    %412 = vmatpush.msra.mxu0 0.0
    %413 = vmatpush.msra.mxu0 0.0
    %414 = vmatpush.msra.mxu0 0.0
    %415 = vmatpush.msra.mxu0 %v374
    %416 = vmatpush.msra.mxu0 %v372
    %417 = vmatpush.msra.mxu0 %v370
    %418 = vmatpush.msra.mxu0 %v368
    %419 = vmatmul.f32.gmra.mxu0 %v380
    %v420 = vpop.f32.mrf.mxu0
    %v421 = vadd.f32 0.0, %v420
    %422 = vmatmul.f32.gmra.mxu0 %v383
    %v423 = vpop.f32.mrf.mxu0
    %v424 = vadd.f32 0.0, %v423
    %425 = vmatmul.f32.gmra.mxu0 %v386
    %v426 = vpop.f32.mrf.mxu0
    %v427 = vadd.f32 0.0, %v426
    %428 = vmatmul.f32.gmra.mxu0 %v389
    %v429 = vpop.f32.mrf.mxu0
    %v430 = vadd.f32 0.0, %v429
    %431 = vmatmul.f32.gmra.mxu0 %v392
    %v432 = vpop.f32.mrf.mxu0
    %v433 = vadd.f32 0.0, %v432
    %434 = vmatmul.f32.gmra.mxu0 %v395
    %v435 = vpop.f32.mrf.mxu0
    %v436 = vadd.f32 0.0, %v435
    %437 = vmatmul.f32.gmra.mxu0 %v398
    %v438 = vpop.f32.mrf.mxu0
    %v439 = vadd.f32 0.0, %v438
    %440 = vmatmul.f32.gmra.mxu0 %v401
    %v441 = vpop.f32.mrf.mxu0
    %v442 = vadd.f32 0.0, %v441
    %443 = vdwg.mxu0
    %v444 = vrcp.pop %v345
    %v445 = vrcp.pop %v348
    %v446 = vrcp.pop %v351
    %v447 = vrcp.pop %v354
    %v448 = vrcp.pop %v357
    %v449 = vrcp.pop %v360
    %v450 = vrcp.pop %v363
    %v451 = vrcp.pop %v366
    %v452 = vmul.f32 %v421, %v444
    %v453 = vmul.f32 %v424, %v445
    %v454 = vmul.f32 %v427, %v446
    %v455 = vmul.f32 %v430, %v447
    %v456 = vmul.f32 %v433, %v448
    %v457 = vmul.f32 %v436, %v449
    %v458 = vmul.f32 %v439, %v450
    %v459 = vmul.f32 %v442, %v451
    %462 = vrot.lane.b32.xlu0 %v454, 16
    %v463 = vpop.permute.xlu0 %462
    %464 = vrot.lane.b32.xlu0 %v455, 16
    %v465 = vpop.permute.xlu0 %464
    %470 = vrot.lane.b32.xlu0 %v456, 32
    %v471 = vpop.permute.xlu0 %470
    %472 = vrot.lane.b32.xlu0 %v457, 32
    %v473 = vpop.permute.xlu0 %472
    %478 = vrot.lane.b32.xlu0 %v458, 48
    %v479 = vpop.permute.xlu0 %478
    %480 = vrot.lane.b32.xlu0 %v459, 48
    %v481 = vpop.permute.xlu0 %480
    %v484 = vsel %vm229, %v452, %v463
    %v485 = vsel %vm229, %v453, %v465
    %v486 = vsel %vm63, %v484, %v471
    %v487 = vsel %vm63, %v485, %v473
    %vm488 = vcmask 392192
    %v489 = vsel %vm488, %v486, %v479
    %v490 = vsel %vm488, %v487, %v481
    %vm491 = vcmask 523264
    %v493 = vsel %vm491, %v489, 0
    %v496 = vsel %vm491, %v490, 0
    %498 = vmatpush.msra.mxu0 0.0
    %499 = vmatpush.msra.mxu0 0.0
    %500 = vmatpush.msra.mxu0 0.0
    %501 = vmatpush.msra.mxu0 0.0
    %502 = vmatpush.msra.mxu0 0.0
    %503 = vmatpush.msra.mxu0 0.0
    %504 = vmatpush.msra.mxu0 0.0
    %505 = vmatpush.msra.mxu0 0.0
    %506 = vmatpush.msra.mxu0 %v60
    %507 = vmatpush.msra.mxu0 %v59
    %508 = vmatpush.msra.mxu0 %v58
    %509 = vmatpush.msra.mxu0 %v57
    %510 = vmatpush.msra.mxu0 %v56
    %511 = vmatpush.msra.mxu0 %v55
    %512 = vmatpush.msra.mxu0 %v54
    %513 = vmatpush.msra.mxu0 %v53
    %514 = vmatmul.f32.gmra.mxu0 %v493
    %v515 = vpop.f32.mrf.mxu0
    %v516 = vadd.f32 0.0, %v515
    %517 = vmatmul.f32.gmra.mxu0 %v496
    %v518 = vpop.f32.mrf.mxu0
    %v519 = vadd.f32 0.0, %v518
    %520 = vdwg.mxu0
    %v521 = vadd.f32 %v26, %v516
    %v522 = vadd.f32 %v27, %v519
    %v523 = vmul.f32 %v521, %v521
    %v524 = vmul.f32 %v522, %v522
    %v525 = vsel %vm63, %v523, 0.0
    %526 = vadd.xlane.f32.xlu0 %v525
    %v527 = vpop.xlane.xlu0 %526
    %v528 = vsel %vm63, %v524, 0.0
    %529 = vadd.xlane.f32.xlu0 %v528
    %v530 = vpop.xlane.xlu0 %529
    %v531 = vmul.f32 %v527, %v76
    %v532 = vmul.f32 %v530, %v76
    %v533 = vadd.f32 %v531, 1e-06
    %v534 = vadd.f32 %v532, 1e-06
    %v535 = vrsqrt.pop %v533
    %v536 = vmul.f32 %v535, %v533
    %v537 = vmul.f32 %v536, %v535
    %v538 = vmul.f32 0.5, %v537
    %v539 = vsub.f32 1.5, %v538
    %v540 = vmul.f32 %v535, %v539
    %vm541 = vweird.f32 %v533
    %vm542 = vweird.f32 %v535
    %vm543 = vmor %vm541, %vm542
    %v544 = vsel %vm543, %v535, %v540
    %v545 = vrsqrt.pop %v534
    %v546 = vmul.f32 %v545, %v534
    %v547 = vmul.f32 %v546, %v545
    %v548 = vmul.f32 0.5, %v547
    %v549 = vsub.f32 1.5, %v548
    %v550 = vmul.f32 %v545, %v549
    %vm551 = vweird.f32 %v534
    %vm552 = vweird.f32 %v545
    %vm553 = vmor %vm551, %vm552
    %v554 = vsel %vm553, %v545, %v550
    %v555 = vmul.f32 %v521, %v544
    %v556 = vmul.f32 %v522, %v554
    %v557 = vperm.slane %v103, 1
    %v558 = vmul.f32 %v555, %v557
    %v559 = vmul.f32 %v556, %v557
    %568 = vrot.lane.b32.xlu0 %v42, 32
    %v569 = vpop.permute.xlu0 %568
    %570 = vrot.lane.b32.xlu0 %v43, 32
    %v571 = vpop.permute.xlu0 %570
    %572 = vrot.lane.b32.xlu0 %v45, 32
    %v573 = vpop.permute.xlu0 %572
    %574 = vrot.lane.b32.xlu0 %v46, 32
    %v575 = vpop.permute.xlu0 %574
    %576 = vrot.lane.b32.xlu0 %v48, 32
    %v577 = vpop.permute.xlu0 %576
    %578 = vrot.lane.b32.xlu0 %v49, 32
    %v579 = vpop.permute.xlu0 %578
    %580 = vrot.lane.b32.xlu0 %v51, 32
    %v581 = vpop.permute.xlu0 %580
    %582 = vrot.lane.b32.xlu0 %v52, 32
    %v583 = vpop.permute.xlu0 %582
    %v584 = vsel %vm63, %v569, %v571
    %v585 = vsel %vm63, %v573, %v575
    %v586 = vsel %vm63, %v577, %v579
    %v587 = vsel %vm63, %v581, %v583
    %v593 = vsel %vm63, %v558, 0
    %v596 = vsel %vm63, %v559, 0
    %598 = vmatpush.msra.mxu0 0.0
    %599 = vmatpush.msra.mxu0 0.0
    %600 = vmatpush.msra.mxu0 0.0
    %601 = vmatpush.msra.mxu0 0.0
    %602 = vmatpush.msra.mxu0 0.0
    %603 = vmatpush.msra.mxu0 0.0
    %604 = vmatpush.msra.mxu0 0.0
    %605 = vmatpush.msra.mxu0 0.0
    %606 = vmatpush.msra.mxu0 0.0
    %607 = vmatpush.msra.mxu0 0.0
    %608 = vmatpush.msra.mxu0 0.0
    %609 = vmatpush.msra.mxu0 0.0
    %610 = vmatpush.msra.mxu0 %v587
    %611 = vmatpush.msra.mxu0 %v586
    %612 = vmatpush.msra.mxu0 %v585
    %613 = vmatpush.msra.mxu0 %v584
    %614 = vmatmul.f32.gmra.mxu0 %v593
    %v615 = vpop.f32.mrf.mxu0
    %v616 = vadd.f32 0.0, %v615
    %617 = vmatmul.f32.gmra.mxu0 %v596
    %v618 = vpop.f32.mrf.mxu0
    %v619 = vadd.f32 0.0, %v618
    %620 = vdwg.mxu0
    %v621 = vmul.f32 %v616, %v616
    %v622 = vmul.f32 %v619, %v619
    %v623 = vmul.f32 %v616, %v621
    %v624 = vmul.f32 %v619, %v622
    %v625 = vmul.f32 %v623, 0.044715
    %v626 = vmul.f32 %v624, 0.044715
    %v627 = vadd.f32 %v616, %v625
    %v628 = vadd.f32 %v619, %v626
    %v629 = vmul.f32 %v627, 0.7978846
    %v630 = vmul.f32 %v628, 0.7978846
    %v631 = vtanh.pop %v629
    %v632 = vtanh.pop %v630
    %v633 = vadd.f32 %v631, 1.0
    %v634 = vadd.f32 %v632, 1.0
    %v635 = vmul.f32 %v633, 0.5
    %v636 = vmul.f32 %v634, 0.5
    %v637 = vmul.f32 %v616, %v635
    %v638 = vmul.f32 %v619, %v636
    %641 = vrot.lane.b32.xlu0 %v616, 64
    %v642 = vpop.permute.xlu0 %641
    %643 = vrot.lane.b32.xlu0 %v619, 64
    %v644 = vpop.permute.xlu0 %643
    %v647 = vmul.f32 %v637, %v642
    %v648 = vmul.f32 %v638, %v644
    %657 = vrot.lane.b32.xlu0 %v53, 96
    %v658 = vpop.permute.xlu0 %657
    %659 = vrot.lane.b32.xlu0 %v54, 96
    %v660 = vpop.permute.xlu0 %659
    %661 = vrot.lane.b32.xlu0 %v55, 96
    %v662 = vpop.permute.xlu0 %661
    %663 = vrot.lane.b32.xlu0 %v56, 96
    %v664 = vpop.permute.xlu0 %663
    %665 = vrot.lane.b32.xlu0 %v57, 96
    %v666 = vpop.permute.xlu0 %665
    %667 = vrot.lane.b32.xlu0 %v58, 96
    %v668 = vpop.permute.xlu0 %667
    %669 = vrot.lane.b32.xlu0 %v59, 96
    %v670 = vpop.permute.xlu0 %669
    %671 = vrot.lane.b32.xlu0 %v60, 96
    %v672 = vpop.permute.xlu0 %671
    %v682 = vsel %vm491, %v647, 0
    %v685 = vsel %vm491, %v648, 0
    %687 = vmatpush.msra.mxu0 0.0
    %688 = vmatpush.msra.mxu0 0.0
    %689 = vmatpush.msra.mxu0 0.0
    %690 = vmatpush.msra.mxu0 0.0
    %691 = vmatpush.msra.mxu0 0.0
    %692 = vmatpush.msra.mxu0 0.0
    %693 = vmatpush.msra.mxu0 0.0
    %694 = vmatpush.msra.mxu0 0.0
    %695 = vmatpush.msra.mxu0 %v672
    %696 = vmatpush.msra.mxu0 %v670
    %697 = vmatpush.msra.mxu0 %v668
    %698 = vmatpush.msra.mxu0 %v666
    %699 = vmatpush.msra.mxu0 %v664
    %700 = vmatpush.msra.mxu0 %v662
    %701 = vmatpush.msra.mxu0 %v660
    %702 = vmatpush.msra.mxu0 %v658
    %703 = vmatmul.f32.gmra.mxu0 %v682
    %v704 = vpop.f32.mrf.mxu0
    %v705 = vadd.f32 0.0, %v704
    %706 = vmatmul.f32.gmra.mxu0 %v685
    %v707 = vpop.f32.mrf.mxu0
    %v708 = vadd.f32 0.0, %v707
    %709 = vdwg.mxu0
    %v710 = vadd.f32 %v521, %v705
    %v711 = vadd.f32 %v522, %v708
    %s712 = scalar_lea.vmem %s3, 96
    %v713 = vld [vmem:[%s712] sm:$0xff]
    %v714 = vld [vmem:[%s712 + $0x8] sm:$0xff]
    %v715 = vld [vmem:[%s712 + $0x10] sm:$0xff]
    %v716 = vld [vmem:[%s712 + $0x18] sm:$0xff]
    %v717 = vld [vmem:[%s712 + $0x20] sm:$0xff]
    %v718 = vld [vmem:[%s712 + $0x28] sm:$0xff]
    %v719 = vld [vmem:[%s712 + $0x30] sm:$0xff]
    %v720 = vld [vmem:[%s712 + $0x38] sm:$0xff]
    %v721 = vld [vmem:[%s712 + $0x40] sm:$0xff]
    %v722 = vld [vmem:[%s712 + $0x48] sm:$0xff]
    %v723 = vld [vmem:[%s712 + $0x50] sm:$0xff]
    %v724 = vld [vmem:[%s712 + $0x58] sm:$0xff]
    %s725 = scalar_lea.vmem %s4, 64
    %v726 = vld [vmem:[%s725] sm:$0xff]
    %v727 = vld [vmem:[%s725 + $0x8] sm:$0xff]
    %v728 = vld [vmem:[%s725 + $0x10] sm:$0xff]
    %v729 = vld [vmem:[%s725 + $0x18] sm:$0xff]
    %v730 = vld [vmem:[%s725 + $0x20] sm:$0xff]
    %v731 = vld [vmem:[%s725 + $0x28] sm:$0xff]
    %v732 = vld [vmem:[%s725 + $0x30] sm:$0xff]
    %v733 = vld [vmem:[%s725 + $0x38] sm:$0xff]
    %v734 = vmul.f32 %v710, %v710
    %v735 = vmul.f32 %v711, %v711
    %v736 = vsel %vm63, %v734, 0.0
    %737 = vadd.xlane.f32.xlu0 %v736
    %v738 = vpop.xlane.xlu0 %737
    %v739 = vsel %vm63, %v735, 0.0
    %740 = vadd.xlane.f32.xlu0 %v739
    %v741 = vpop.xlane.xlu0 %740
    %v742 = vmul.f32 %v738, %v76
    %v743 = vmul.f32 %v741, %v76
    %v744 = vadd.f32 %v742, 1e-06
    %v745 = vadd.f32 %v743, 1e-06
    %v746 = vrsqrt.pop %v744
    %v747 = vmul.f32 %v746, %v744
    %v748 = vmul.f32 %v747, %v746
    %v749 = vmul.f32 0.5, %v748
    %v750 = vsub.f32 1.5, %v749
    %v751 = vmul.f32 %v746, %v750
    %vm752 = vweird.f32 %v744
    %vm753 = vweird.f32 %v746
    %vm754 = vmor %vm752, %vm753
    %v755 = vsel %vm754, %v746, %v751
    %v756 = vrsqrt.pop %v745
    %v757 = vmul.f32 %v756, %v745
    %v758 = vmul.f32 %v757, %v756
    %v759 = vmul.f32 0.5, %v758
    %v760 = vsub.f32 1.5, %v759
    %v761 = vmul.f32 %v756, %v760
    %vm762 = vweird.f32 %v745
    %vm763 = vweird.f32 %v756
    %vm764 = vmor %vm762, %vm763
    %v765 = vsel %vm764, %v756, %v761
    %v766 = vmul.f32 %v710, %v755
    %v767 = vmul.f32 %v711, %v765
    %v768 = vperm.slane %v103, 2
    %v769 = vmul.f32 %v766, %v768
    %v770 = vmul.f32 %v767, %v768
    %v772 = vsel %vm63, %v769, 0
    %v775 = vsel %vm63, %v770, 0
    %777 = vmatpush.msra.mxu0 0.0
    %778 = vmatpush.msra.mxu0 0.0
    %779 = vmatpush.msra.mxu0 0.0
    %780 = vmatpush.msra.mxu0 0.0
    %781 = vmatpush.msra.mxu0 0.0
    %782 = vmatpush.msra.mxu0 0.0
    %783 = vmatpush.msra.mxu0 0.0
    %784 = vmatpush.msra.mxu0 0.0
    %785 = vmatpush.msra.mxu0 0.0
    %786 = vmatpush.msra.mxu0 0.0
    %787 = vmatpush.msra.mxu0 0.0
    %788 = vmatpush.msra.mxu0 0.0
    %789 = vmatpush.msra.mxu0 %v722
    %790 = vmatpush.msra.mxu0 %v719
    %791 = vmatpush.msra.mxu0 %v716
    %792 = vmatpush.msra.mxu0 %v713
    %793 = vmatmul.f32.gmra.mxu0 %v772
    %v794 = vpop.f32.mrf.mxu0
    %v795 = vadd.f32 0.0, %v794
    %796 = vmatmul.f32.gmra.mxu0 %v775
    %v797 = vpop.f32.mrf.mxu0
    %v798 = vadd.f32 0.0, %v797
    %799 = vdwg.mxu0
    %800 = vmatpush.msra.mxu0 0.0
    %801 = vmatpush.msra.mxu0 0.0
    %802 = vmatpush.msra.mxu0 0.0
    %803 = vmatpush.msra.mxu0 0.0
    %804 = vmatpush.msra.mxu0 0.0
    %805 = vmatpush.msra.mxu0 0.0
    %806 = vmatpush.msra.mxu0 0.0
    %807 = vmatpush.msra.mxu0 0.0
    %808 = vmatpush.msra.mxu0 0.0
    %809 = vmatpush.msra.mxu0 0.0
    %810 = vmatpush.msra.mxu0 0.0
    %811 = vmatpush.msra.mxu0 0.0
    %812 = vmatpush.msra.mxu0 %v723
    %813 = vmatpush.msra.mxu0 %v720
    %814 = vmatpush.msra.mxu0 %v717
    %815 = vmatpush.msra.mxu0 %v714
    %816 = vmatmul.f32.gmra.mxu0 %v772
    %v817 = vpop.f32.mrf.mxu0
    %v818 = vadd.f32 0.0, %v817
    %819 = vmatmul.f32.gmra.mxu0 %v775
    %v820 = vpop.f32.mrf.mxu0
    %v821 = vadd.f32 0.0, %v820
    %822 = vdwg.mxu0
    %v823 = vmul.f32 %v795, %v28
    %v824 = vmul.f32 %v798, %v30
    %v825 = vmul.f32 %v818, %v164
    %v826 = vmul.f32 %v821, %v166
    %v827 = vadd.f32 %v823, %v825
    %v828 = vadd.f32 %v824, %v826
    %v829 = vmul.f32 %v827, 0.25
    %v830 = vmul.f32 %v828, 0.25
    %v831 = vmul.f32 %v795, %v178
    %v832 = vmul.f32 %v798, %v180
    %v833 = vmul.f32 %v818, %v186
    %v834 = vmul.f32 %v821, %v188
    %v835 = vadd.f32 %v831, %v833
    %v836 = vadd.f32 %v832, %v834
    %839 = vrot.lane.b32.xlu0 %v829, 112
    %v840 = vpop.permute.xlu0 %839
    %841 = vrot.lane.b32.xlu0 %v830, 112
    %v842 = vpop.permute.xlu0 %841
    %843 = vrot.lane.b32.xlu0 %v829, 96
    %v844 = vpop.permute.xlu0 %843
    %845 = vrot.lane.b32.xlu0 %v830, 96
    %v846 = vpop.permute.xlu0 %845
    %847 = vrot.lane.b32.xlu0 %v829, 80
    %v848 = vpop.permute.xlu0 %847
    %849 = vrot.lane.b32.xlu0 %v830, 80
    %v850 = vpop.permute.xlu0 %849
    %853 = vrot.lane.b32.xlu0 %v835, 112
    %v854 = vpop.permute.xlu0 %853
    %855 = vrot.lane.b32.xlu0 %v836, 112
    %v856 = vpop.permute.xlu0 %855
    %859 = vrot.lane.b32.xlu0 %v795, 112
    %v860 = vpop.permute.xlu0 %859
    %861 = vrot.lane.b32.xlu0 %v798, 112
    %v862 = vpop.permute.xlu0 %861
    %863 = vrot.lane.b32.xlu0 %v835, 64
    %v864 = vpop.permute.xlu0 %863
    %865 = vrot.lane.b32.xlu0 %v836, 64
    %v866 = vpop.permute.xlu0 %865
    %867 = vrot.lane.b32.xlu0 %v854, 64
    %v868 = vpop.permute.xlu0 %867
    %869 = vrot.lane.b32.xlu0 %v856, 64
    %v870 = vpop.permute.xlu0 %869
    %v871 = vsel %vm229, %v829, 0
    %v873 = vsel %vm229, %v830, 0
    %v875 = vsel %vm229, %v840, 0
    %v877 = vsel %vm229, %v842, 0
    %v879 = vsel %vm229, %v844, 0
    %v881 = vsel %vm229, %v846, 0
    %v883 = vsel %vm229, %v848, 0
    %v885 = vsel %vm229, %v850, 0
    %v887 = vsel %vm229, %v864, 0
    %v889 = vsel %vm229, %v866, 0
    %v891 = vsel %vm229, %v868, 0
    %v893 = vsel %vm229, %v870, 0
    %895 = vmatpush.xpose.msra.mxu0 0.0
    %896 = vmatpush.xpose.msra.mxu0 0.0
    %897 = vmatpush.xpose.msra.mxu0 0.0
    %898 = vmatpush.xpose.msra.mxu0 0.0
    %899 = vmatpush.xpose.msra.mxu0 0.0
    %900 = vmatpush.xpose.msra.mxu0 0.0
    %901 = vmatpush.xpose.msra.mxu0 0.0
    %902 = vmatpush.xpose.msra.mxu0 0.0
    %903 = vmatpush.xpose.msra.mxu0 0.0
    %904 = vmatpush.xpose.msra.mxu0 0.0
    %905 = vmatpush.xpose.msra.mxu0 0.0
    %906 = vmatpush.xpose.msra.mxu0 0.0
    %907 = vmatpush.xpose.msra.mxu0 %v893
    %908 = vmatpush.xpose.msra.mxu0 %v891
    %909 = vmatpush.xpose.msra.mxu0 %v889
    %910 = vmatpush.xpose.msra.mxu0 %v887
    %911 = vmatmul.f32.gmra.mxu0 %v871
    %v912 = vpop.f32.mrf.mxu0
    %v913 = vadd.f32 %v32, %v912
    %914 = vmatmul.f32.gmra.mxu0 %v873
    %v915 = vpop.f32.mrf.mxu0
    %v916 = vadd.f32 %v33, %v915
    %917 = vmatmul.f32.gmra.mxu0 %v875
    %v918 = vpop.f32.mrf.mxu0
    %v919 = vadd.f32 %v34, %v918
    %920 = vmatmul.f32.gmra.mxu0 %v877
    %v921 = vpop.f32.mrf.mxu0
    %v922 = vadd.f32 %v35, %v921
    %923 = vmatmul.f32.gmra.mxu0 %v879
    %v924 = vpop.f32.mrf.mxu0
    %v925 = vadd.f32 %v36, %v924
    %926 = vmatmul.f32.gmra.mxu0 %v881
    %v927 = vpop.f32.mrf.mxu0
    %v928 = vadd.f32 %v37, %v927
    %929 = vmatmul.f32.gmra.mxu0 %v883
    %v930 = vpop.f32.mrf.mxu0
    %v931 = vadd.f32 %v38, %v930
    %932 = vmatmul.f32.gmra.mxu0 %v885
    %v933 = vpop.f32.mrf.mxu0
    %v934 = vadd.f32 %v39, %v933
    %935 = vdwg.mxu0
    %v936 = vsel %vm63, %v913, -inf
    %937 = vmax.xlane.f32.xlu0 %v936
    %v938 = vpop.xlane.xlu0 %937
    %v939 = vsel %vm63, %v916, -inf
    %940 = vmax.xlane.f32.xlu0 %v939
    %v941 = vpop.xlane.xlu0 %940
    %v942 = vsel %vm63, %v919, -inf
    %943 = vmax.xlane.f32.xlu0 %v942
    %v944 = vpop.xlane.xlu0 %943
    %v945 = vsel %vm63, %v922, -inf
    %946 = vmax.xlane.f32.xlu0 %v945
    %v947 = vpop.xlane.xlu0 %946
    %v948 = vsel %vm63, %v925, -inf
    %949 = vmax.xlane.f32.xlu0 %v948
    %v950 = vpop.xlane.xlu0 %949
    %v951 = vsel %vm63, %v928, -inf
    %952 = vmax.xlane.f32.xlu0 %v951
    %v953 = vpop.xlane.xlu0 %952
    %v954 = vsel %vm63, %v931, -inf
    %955 = vmax.xlane.f32.xlu0 %v954
    %v956 = vpop.xlane.xlu0 %955
    %v957 = vsel %vm63, %v934, -inf
    %958 = vmax.xlane.f32.xlu0 %v957
    %v959 = vpop.xlane.xlu0 %958
    %v960 = vsub.f32 %v913, %v938
    %v961 = vsub.f32 %v916, %v941
    %v962 = vsub.f32 %v919, %v944
    %v963 = vsub.f32 %v922, %v947
    %v964 = vsub.f32 %v925, %v950
    %v965 = vsub.f32 %v928, %v953
    %v966 = vsub.f32 %v931, %v956
    %v967 = vsub.f32 %v934, %v959
    %v968 = vmul.f32 %v960, 1.442695
    %v969 = vpow.pop %v968
    %v970 = vmul.f32 %v961, 1.442695
    %v971 = vpow.pop %v970
    %v972 = vmul.f32 %v962, 1.442695
    %v973 = vpow.pop %v972
    %v974 = vmul.f32 %v963, 1.442695
    %v975 = vpow.pop %v974
    %v976 = vmul.f32 %v964, 1.442695
    %v977 = vpow.pop %v976
    %v978 = vmul.f32 %v965, 1.442695
    %v979 = vpow.pop %v978
    %v980 = vmul.f32 %v966, 1.442695
    %v981 = vpow.pop %v980
    %v982 = vmul.f32 %v967, 1.442695
    %v983 = vpow.pop %v982
    %v984 = vsel %vm63, %v969, 0.0
    %985 = vadd.xlane.f32.xlu0 %v984
    %v986 = vpop.xlane.xlu0 %985
    %v987 = vsel %vm63, %v971, 0.0
    %988 = vadd.xlane.f32.xlu0 %v987
    %v989 = vpop.xlane.xlu0 %988
    %v990 = vsel %vm63, %v973, 0.0
    %991 = vadd.xlane.f32.xlu0 %v990
    %v992 = vpop.xlane.xlu0 %991
    %v993 = vsel %vm63, %v975, 0.0
    %994 = vadd.xlane.f32.xlu0 %v993
    %v995 = vpop.xlane.xlu0 %994
    %v996 = vsel %vm63, %v977, 0.0
    %997 = vadd.xlane.f32.xlu0 %v996
    %v998 = vpop.xlane.xlu0 %997
    %v999 = vsel %vm63, %v979, 0.0
    %1000 = vadd.xlane.f32.xlu0 %v999
    %v1001 = vpop.xlane.xlu0 %1000
    %v1002 = vsel %vm63, %v981, 0.0
    %1003 = vadd.xlane.f32.xlu0 %v1002
    %v1004 = vpop.xlane.xlu0 %1003
    %v1005 = vsel %vm63, %v983, 0.0
    %1006 = vadd.xlane.f32.xlu0 %v1005
    %v1007 = vpop.xlane.xlu0 %1006
    %1008 = vrot.lane.b32.xlu0 %v795, 32
    %v1009 = vpop.permute.xlu0 %1008
    %1010 = vrot.lane.b32.xlu0 %v798, 32
    %v1011 = vpop.permute.xlu0 %1010
    %1012 = vrot.lane.b32.xlu0 %v860, 32
    %v1013 = vpop.permute.xlu0 %1012
    %1014 = vrot.lane.b32.xlu0 %v862, 32
    %v1015 = vpop.permute.xlu0 %1014
    %v1021 = vsel %vm63, %v969, 0
    %v1024 = vsel %vm63, %v971, 0
    %v1027 = vsel %vm63, %v973, 0
    %v1030 = vsel %vm63, %v975, 0
    %v1033 = vsel %vm63, %v977, 0
    %v1036 = vsel %vm63, %v979, 0
    %v1039 = vsel %vm63, %v981, 0
    %v1042 = vsel %vm63, %v983, 0
    %1044 = vmatpush.msra.mxu0 0.0
    %1045 = vmatpush.msra.mxu0 0.0
    %1046 = vmatpush.msra.mxu0 0.0
    %1047 = vmatpush.msra.mxu0 0.0
    %1048 = vmatpush.msra.mxu0 0.0
    %1049 = vmatpush.msra.mxu0 0.0
    %1050 = vmatpush.msra.mxu0 0.0
    %1051 = vmatpush.msra.mxu0 0.0
    %1052 = vmatpush.msra.mxu0 0.0
    %1053 = vmatpush.msra.mxu0 0.0
    %1054 = vmatpush.msra.mxu0 0.0
    %1055 = vmatpush.msra.mxu0 0.0
    %1056 = vmatpush.msra.mxu0 %v1015
    %1057 = vmatpush.msra.mxu0 %v1013
    %1058 = vmatpush.msra.mxu0 %v1011
    %1059 = vmatpush.msra.mxu0 %v1009
    %1060 = vmatmul.f32.gmra.mxu0 %v1021
    %v1061 = vpop.f32.mrf.mxu0
    %v1062 = vadd.f32 0.0, %v1061
    %1063 = vmatmul.f32.gmra.mxu0 %v1024
    %v1064 = vpop.f32.mrf.mxu0
    %v1065 = vadd.f32 0.0, %v1064
    %1066 = vmatmul.f32.gmra.mxu0 %v1027
    %v1067 = vpop.f32.mrf.mxu0
    %v1068 = vadd.f32 0.0, %v1067
    %1069 = vmatmul.f32.gmra.mxu0 %v1030
    %v1070 = vpop.f32.mrf.mxu0
    %v1071 = vadd.f32 0.0, %v1070
    %1072 = vmatmul.f32.gmra.mxu0 %v1033
    %v1073 = vpop.f32.mrf.mxu0
    %v1074 = vadd.f32 0.0, %v1073
    %1075 = vmatmul.f32.gmra.mxu0 %v1036
    %v1076 = vpop.f32.mrf.mxu0
    %v1077 = vadd.f32 0.0, %v1076
    %1078 = vmatmul.f32.gmra.mxu0 %v1039
    %v1079 = vpop.f32.mrf.mxu0
    %v1080 = vadd.f32 0.0, %v1079
    %1081 = vmatmul.f32.gmra.mxu0 %v1042
    %v1082 = vpop.f32.mrf.mxu0
    %v1083 = vadd.f32 0.0, %v1082
    %1084 = vdwg.mxu0
    %v1085 = vrcp.pop %v986
    %v1086 = vrcp.pop %v989
    %v1087 = vrcp.pop %v992
    %v1088 = vrcp.pop %v995
    %v1089 = vrcp.pop %v998
    %v1090 = vrcp.pop %v1001
    %v1091 = vrcp.pop %v1004
    %v1092 = vrcp.pop %v1007
    %v1093 = vmul.f32 %v1062, %v1085
    %v1094 = vmul.f32 %v1065, %v1086
    %v1095 = vmul.f32 %v1068, %v1087
    %v1096 = vmul.f32 %v1071, %v1088
    %v1097 = vmul.f32 %v1074, %v1089
    %v1098 = vmul.f32 %v1077, %v1090
    %v1099 = vmul.f32 %v1080, %v1091
    %v1100 = vmul.f32 %v1083, %v1092
    %1103 = vrot.lane.b32.xlu0 %v1095, 16
    %v1104 = vpop.permute.xlu0 %1103
    %1105 = vrot.lane.b32.xlu0 %v1096, 16
    %v1106 = vpop.permute.xlu0 %1105
    %1111 = vrot.lane.b32.xlu0 %v1097, 32
    %v1112 = vpop.permute.xlu0 %1111
    %1113 = vrot.lane.b32.xlu0 %v1098, 32
    %v1114 = vpop.permute.xlu0 %1113
    %1119 = vrot.lane.b32.xlu0 %v1099, 48
    %v1120 = vpop.permute.xlu0 %1119
    %1121 = vrot.lane.b32.xlu0 %v1100, 48
    %v1122 = vpop.permute.xlu0 %1121
    %v1125 = vsel %vm229, %v1093, %v1104
    %v1126 = vsel %vm229, %v1094, %v1106
    %v1127 = vsel %vm63, %v1125, %v1112
    %v1128 = vsel %vm63, %v1126, %v1114
    %v1129 = vsel %vm488, %v1127, %v1120
    %v1130 = vsel %vm488, %v1128, %v1122
    %v1132 = vsel %vm491, %v1129, 0
    %v1135 = vsel %vm491, %v1130, 0
    %1137 = vmatpush.msra.mxu0 0.0
    %1138 = vmatpush.msra.mxu0 0.0
    %1139 = vmatpush.msra.mxu0 0.0
    %1140 = vmatpush.msra.mxu0 0.0
    %1141 = vmatpush.msra.mxu0 0.0
    %1142 = vmatpush.msra.mxu0 0.0
    %1143 = vmatpush.msra.mxu0 0.0
    %1144 = vmatpush.msra.mxu0 0.0
    %1145 = vmatpush.msra.mxu0 %v733
    %1146 = vmatpush.msra.mxu0 %v732
    %1147 = vmatpush.msra.mxu0 %v731
    %1148 = vmatpush.msra.mxu0 %v730
    %1149 = vmatpush.msra.mxu0 %v729
    %1150 = vmatpush.msra.mxu0 %v728
    %1151 = vmatpush.msra.mxu0 %v727
    %1152 = vmatpush.msra.mxu0 %v726
    %1153 = vmatmul.f32.gmra.mxu0 %v1132
    %v1154 = vpop.f32.mrf.mxu0
    %v1155 = vadd.f32 0.0, %v1154
    %1156 = vmatmul.f32.gmra.mxu0 %v1135
    %v1157 = vpop.f32.mrf.mxu0
    %v1158 = vadd.f32 0.0, %v1157
    %1159 = vdwg.mxu0
    %v1160 = vadd.f32 %v710, %v1155
    %v1161 = vadd.f32 %v711, %v1158
    %v1162 = vmul.f32 %v1160, %v1160
    %v1163 = vmul.f32 %v1161, %v1161
    %v1164 = vsel %vm63, %v1162, 0.0
    %1165 = vadd.xlane.f32.xlu0 %v1164
    %v1166 = vpop.xlane.xlu0 %1165
    %v1167 = vsel %vm63, %v1163, 0.0
    %1168 = vadd.xlane.f32.xlu0 %v1167
    %v1169 = vpop.xlane.xlu0 %1168
    %v1170 = vmul.f32 %v1166, %v76
    %v1171 = vmul.f32 %v1169, %v76
    %v1172 = vadd.f32 %v1170, 1e-06
    %v1173 = vadd.f32 %v1171, 1e-06
    %v1174 = vrsqrt.pop %v1172
    %v1175 = vmul.f32 %v1174, %v1172
    %v1176 = vmul.f32 %v1175, %v1174
    %v1177 = vmul.f32 0.5, %v1176
    %v1178 = vsub.f32 1.5, %v1177
    %v1179 = vmul.f32 %v1174, %v1178
    %vm1180 = vweird.f32 %v1172
    %vm1181 = vweird.f32 %v1174
    %vm1182 = vmor %vm1180, %vm1181
    %v1183 = vsel %vm1182, %v1174, %v1179
    %v1184 = vrsqrt.pop %v1173
    %v1185 = vmul.f32 %v1184, %v1173
    %v1186 = vmul.f32 %v1185, %v1184
    %v1187 = vmul.f32 0.5, %v1186
    %v1188 = vsub.f32 1.5, %v1187
    %v1189 = vmul.f32 %v1184, %v1188
    %vm1190 = vweird.f32 %v1173
    %vm1191 = vweird.f32 %v1184
    %vm1192 = vmor %vm1190, %vm1191
    %v1193 = vsel %vm1192, %v1184, %v1189
    %v1194 = vmul.f32 %v1160, %v1183
    %v1195 = vmul.f32 %v1161, %v1193
    %v1196 = vperm.slane %v103, 3
    %v1197 = vmul.f32 %v1194, %v1196
    %v1198 = vmul.f32 %v1195, %v1196
    %1207 = vrot.lane.b32.xlu0 %v714, 32
    %v1208 = vpop.permute.xlu0 %1207
    %1209 = vrot.lane.b32.xlu0 %v715, 32
    %v1210 = vpop.permute.xlu0 %1209
    %1211 = vrot.lane.b32.xlu0 %v717, 32
    %v1212 = vpop.permute.xlu0 %1211
    %1213 = vrot.lane.b32.xlu0 %v718, 32
    %v1214 = vpop.permute.xlu0 %1213
    %1215 = vrot.lane.b32.xlu0 %v720, 32
    %v1216 = vpop.permute.xlu0 %1215
    %1217 = vrot.lane.b32.xlu0 %v721, 32
    %v1218 = vpop.permute.xlu0 %1217
    %1219 = vrot.lane.b32.xlu0 %v723, 32
    %v1220 = vpop.permute.xlu0 %1219
    %1221 = vrot.lane.b32.xlu0 %v724, 32
    %v1222 = vpop.permute.xlu0 %1221
    %v1223 = vsel %vm63, %v1208, %v1210
    %v1224 = vsel %vm63, %v1212, %v1214
    %v1225 = vsel %vm63, %v1216, %v1218
    %v1226 = vsel %vm63, %v1220, %v1222
    %v1232 = vsel %vm63, %v1197, 0
    %v1235 = vsel %vm63, %v1198, 0
    %1237 = vmatpush.msra.mxu0 0.0
    %1238 = vmatpush.msra.mxu0 0.0
    %1239 = vmatpush.msra.mxu0 0.0
    %1240 = vmatpush.msra.mxu0 0.0
    %1241 = vmatpush.msra.mxu0 0.0
    %1242 = vmatpush.msra.mxu0 0.0
    %1243 = vmatpush.msra.mxu0 0.0
    %1244 = vmatpush.msra.mxu0 0.0
    %1245 = vmatpush.msra.mxu0 0.0
    %1246 = vmatpush.msra.mxu0 0.0
    %1247 = vmatpush.msra.mxu0 0.0
    %1248 = vmatpush.msra.mxu0 0.0
    %1249 = vmatpush.msra.mxu0 %v1226
    %1250 = vmatpush.msra.mxu0 %v1225
    %1251 = vmatpush.msra.mxu0 %v1224
    %1252 = vmatpush.msra.mxu0 %v1223
    %1253 = vmatmul.f32.gmra.mxu0 %v1232
    %v1254 = vpop.f32.mrf.mxu0
    %v1255 = vadd.f32 0.0, %v1254
    %1256 = vmatmul.f32.gmra.mxu0 %v1235
    %v1257 = vpop.f32.mrf.mxu0
    %v1258 = vadd.f32 0.0, %v1257
    %1259 = vdwg.mxu0
    %v1260 = vmul.f32 %v1255, %v1255
    %v1261 = vmul.f32 %v1258, %v1258
    %v1262 = vmul.f32 %v1255, %v1260
    %v1263 = vmul.f32 %v1258, %v1261
    %v1264 = vmul.f32 %v1262, 0.044715
    %v1265 = vmul.f32 %v1263, 0.044715
    %v1266 = vadd.f32 %v1255, %v1264
    %v1267 = vadd.f32 %v1258, %v1265
    %v1268 = vmul.f32 %v1266, 0.7978846
    %v1269 = vmul.f32 %v1267, 0.7978846
    %v1270 = vtanh.pop %v1268
    %v1271 = vtanh.pop %v1269
    %v1272 = vadd.f32 %v1270, 1.0
    %v1273 = vadd.f32 %v1271, 1.0
    %v1274 = vmul.f32 %v1272, 0.5
    %v1275 = vmul.f32 %v1273, 0.5
    %v1276 = vmul.f32 %v1255, %v1274
    %v1277 = vmul.f32 %v1258, %v1275
    %1280 = vrot.lane.b32.xlu0 %v1255, 64
    %v1281 = vpop.permute.xlu0 %1280
    %1282 = vrot.lane.b32.xlu0 %v1258, 64
    %v1283 = vpop.permute.xlu0 %1282
    %v1286 = vmul.f32 %v1276, %v1281
    %v1287 = vmul.f32 %v1277, %v1283
    %1296 = vrot.lane.b32.xlu0 %v726, 96
    %v1297 = vpop.permute.xlu0 %1296
    %1298 = vrot.lane.b32.xlu0 %v727, 96
    %v1299 = vpop.permute.xlu0 %1298
    %1300 = vrot.lane.b32.xlu0 %v728, 96
    %v1301 = vpop.permute.xlu0 %1300
    %1302 = vrot.lane.b32.xlu0 %v729, 96
    %v1303 = vpop.permute.xlu0 %1302
    %1304 = vrot.lane.b32.xlu0 %v730, 96
    %v1305 = vpop.permute.xlu0 %1304
    %1306 = vrot.lane.b32.xlu0 %v731, 96
    %v1307 = vpop.permute.xlu0 %1306
    %1308 = vrot.lane.b32.xlu0 %v732, 96
    %v1309 = vpop.permute.xlu0 %1308
    %1310 = vrot.lane.b32.xlu0 %v733, 96
    %v1311 = vpop.permute.xlu0 %1310
    %v1321 = vsel %vm491, %v1286, 0
    %v1324 = vsel %vm491, %v1287, 0
    %1326 = vmatpush.msra.mxu0 0.0
    %1327 = vmatpush.msra.mxu0 0.0
    %1328 = vmatpush.msra.mxu0 0.0
    %1329 = vmatpush.msra.mxu0 0.0
    %1330 = vmatpush.msra.mxu0 0.0
    %1331 = vmatpush.msra.mxu0 0.0
    %1332 = vmatpush.msra.mxu0 0.0
    %1333 = vmatpush.msra.mxu0 0.0
    %1334 = vmatpush.msra.mxu0 %v1311
    %1335 = vmatpush.msra.mxu0 %v1309
    %1336 = vmatpush.msra.mxu0 %v1307
    %1337 = vmatpush.msra.mxu0 %v1305
    %1338 = vmatpush.msra.mxu0 %v1303
    %1339 = vmatpush.msra.mxu0 %v1301
    %1340 = vmatpush.msra.mxu0 %v1299
    %1341 = vmatpush.msra.mxu0 %v1297
    %1342 = vmatmul.f32.gmra.mxu0 %v1321
    %v1343 = vpop.f32.mrf.mxu0
    %v1344 = vadd.f32 0.0, %v1343
    %1345 = vmatmul.f32.gmra.mxu0 %v1324
    %v1346 = vpop.f32.mrf.mxu0
    %v1347 = vadd.f32 0.0, %v1346
    %1348 = vdwg.mxu0
    %v1349 = vadd.f32 %v1160, %v1344
    %v1350 = vadd.f32 %v1161, %v1347
    %v1351 = vmul.f32 %v1349, %v1349
    %v1352 = vmul.f32 %v1350, %v1350
    %v1353 = vsel %vm63, %v1351, 0.0
    %1354 = vadd.xlane.f32.xlu0 %v1353
    %v1355 = vpop.xlane.xlu0 %1354
    %v1356 = vsel %vm63, %v1352, 0.0
    %1357 = vadd.xlane.f32.xlu0 %v1356
    %v1358 = vpop.xlane.xlu0 %1357
    %v1359 = vmul.f32 %v1355, %v76
    %v1360 = vmul.f32 %v1358, %v76
    %v1361 = vadd.f32 %v1359, 1e-06
    %v1362 = vadd.f32 %v1360, 1e-06
    %v1363 = vrsqrt.pop %v1361
    %v1364 = vmul.f32 %v1363, %v1361
    %v1365 = vmul.f32 %v1364, %v1363
    %v1366 = vmul.f32 0.5, %v1365
    %v1367 = vsub.f32 1.5, %v1366
    %v1368 = vmul.f32 %v1363, %v1367
    %vm1369 = vweird.f32 %v1361
    %vm1370 = vweird.f32 %v1363
    %vm1371 = vmor %vm1369, %vm1370
    %v1372 = vsel %vm1371, %v1363, %v1368
    %v1373 = vrsqrt.pop %v1362
    %v1374 = vmul.f32 %v1373, %v1362
    %v1375 = vmul.f32 %v1374, %v1373
    %v1376 = vmul.f32 0.5, %v1375
    %v1377 = vsub.f32 1.5, %v1376
    %v1378 = vmul.f32 %v1373, %v1377
    %vm1379 = vweird.f32 %v1362
    %vm1380 = vweird.f32 %v1373
    %vm1381 = vmor %vm1379, %vm1380
    %v1382 = vsel %vm1381, %v1373, %v1378
    %v1383 = vmul.f32 %v1349, %v1372
    %v1384 = vmul.f32 %v1350, %v1382
    %v1385 = vperm.slane %v103, 4
    %v1386 = vmul.f32 %v1383, %v1385
    %v1387 = vmul.f32 %v1384, %v1385
    %1388 = vst.msk [vmem:[#allocation2] sm:$0xff] %vm63, %v1386
    %1389 = vst.msk [vmem:[#allocation2 + $0x8] sm:$0xff] %vm63, %v1387
    // Predicated region
    $region26: #{_lambda_.1} parent=1 // pred_check
      _
    $region27: #{_lambda_.1} parent=1 // pred_check_branch
      %1391 = sbr.rel (0) target = $region29
    $region28: #{_lambda_.1} parent=1 // pred_region
      %1393 = vsyncadd [#allocation3], 0
      %s1394 = sshll.u32 [#allocation2], 4
      %s1395 = int_to_ptr.vmem [resolvable:$true] %s1394
      %s1396 = sshll.u32 %s6, 4
      %s1397 = int_to_ptr.hbm [resolvable:$true] %s1396
      %1402 = dma.vmem_to_hbm [thread:$0]  %s1395, 256, %s1397, [#allocation3], 128, 128, 8
    $region29: #{_lambda_.1} parent=1 // pred_fallthru
      _
    // Predicated region
    $region30: #{_lambda_.1} parent=1 // pred_check
      _
    $region31: #{_lambda_.1} parent=1 // pred_check_branch
      %1404 = sbr.rel (0) target = $region33
    $region32: #{_lambda_.1} parent=1 // pred_region
      %1406 = dma.done [#allocation3], 256
    $region33: #{_lambda_.1} parent=1 // pred_fallthru
      _
    %1407 = vsyncpa [#allocation3], 1

</llo_original>
